<compile_context>
chip_gen: v7x
topology: tpu7x:2x2x1
jax: 0.10.0
libtpu: 0.0.40
codegen_flags: <defaults>
</compile_context>

<pallas_src>
import jax
import jax.numpy as jnp
from jax import lax
from jax.experimental import pallas as pl
from jax.experimental.pallas import tpu as pltpu


# -----------------------------------------------------------------------------
# Pallas kernel: packed-tap conv matmul + ReLU + max-pool + fused Linear
# -----------------------------------------------------------------------------
def _make_kernel(filter_sizes, seq_len, n_filters, b_tile):
    filter_sizes = tuple(int(f) for f in filter_sizes)
    S = int(seq_len)
    F = int(n_filters)
    BS = b_tile * S
    max_fs = max(filter_sizes)

    def kernel(emb_ref, wall_ref, ball_ref, fcw_ref, fcb_ref, out_ref):
        # (B_TILE, S, E) bf16 -> (B_TILE*S, E); lane dim (E) untouched.
        emb2d = emb_ref[...].reshape(BS, emb_ref.shape[-1])

        # One big MXU matmul covering every tap of every filter size.
        taps = jnp.dot(emb2d, wall_ref[...],
                       preferred_element_type=jnp.float32)        # (BS, NT*F) f32

        # Pre-compute time-shifted copies: one sublane rotation per distinct tap
        # offset.  Rows that wrap across batch boundaries land at t >= L and are
        # masked out before the max-pool.
        shifted = [taps]
        for j in range(1, max_fs):
            shifted.append(pltpu.roll(taps, shift=BS - j, axis=0))

        logits = jnp.zeros(out_ref.shape, jnp.float32)             # (B_TILE, O_pad)
        col = 0
        for idx, fs in enumerate(filter_sizes):
            L = S - fs + 1
            acc = shifted[0][:, col * F:(col + 1) * F]             # tap j = 0
            for j in range(1, fs):
                acc = acc + shifted[j][:, (col + j) * F:(col + j + 1) * F]
            col += fs

            acc = acc + ball_ref[...][idx:idx + 1, :]              # (1, F) bias
            acc = jnp.maximum(acc, 0.0)                            # ReLU
            acc = acc.reshape(b_tile, S, F)
            t_idx = lax.broadcasted_iota(jnp.int32, (b_tile, S, F), 1)
            acc = jnp.where(t_idx < L, acc, 0.0)                   # drop invalid rows
            pooled = jnp.max(acc, axis=1)                          # (B_TILE, F)

            # Fold the Linear layer in per filter size (no concat, lane-dense N).
            fcw_slice = fcw_ref[...][idx * F:(idx + 1) * F, :]     # (F, O_pad)
            logits = logits + jnp.dot(pooled, fcw_slice,
                                      preferred_element_type=jnp.float32)

        # Dropout: identity at inference (eval mode).
        out_ref[...] = logits + fcb_ref[...]

    return kernel


# -----------------------------------------------------------------------------
# Wrapper
# -----------------------------------------------------------------------------
def cnn_classifier_forward(text, params, filter_sizes, *, b_tile=8):
    """text: (B, S) int32 token ids. Returns logits (B, output_dim)."""
    filter_sizes = tuple(int(f) for f in filter_sizes)

    # Embedding gather as XLA glue, in bf16 (halves HBM traffic into the kernel).
    emb_table = params["embedding"].astype(jnp.bfloat16)
    embedded = jnp.take(emb_table, text, axis=0)                    # (B, S, E) bf16
    B, S, E = embedded.shape

    F = params[f"conv{filter_sizes[0]}_w"].shape[-1]
    O = params["fc_b"].shape[-1]
    O_pad = ((O + 127) // 128) * 128
    NT = sum(filter_sizes)
    n_fs = len(filter_sizes)

    b_tile = min(b_tile, B)
    assert B % b_tile == 0, "batch must be divisible by the batch tile"

    # Pack all conv taps (all filter sizes) along N: (E, NT*F), bf16.
    w_all = jnp.concatenate(
        [params[f"conv{fs}_w"][j] for fs in filter_sizes for j in range(fs)],
        axis=-1,
    ).astype(jnp.bfloat16)
    # Conv biases stacked: (n_fs, F), f32.
    b_all = jnp.concatenate(
        [params[f"conv{fs}_b"] for fs in filter_sizes], axis=0
    ).astype(jnp.float32)
    # FC weight/bias zero-padded to a lane-dense 128-wide output.
    fcw = jnp.zeros((n_fs * F, O_pad), jnp.float32).at[:, :O].set(params["fc_w"])
    fcb = jnp.zeros((1, O_pad), jnp.float32).at[:, :O].set(params["fc_b"])

    kernel = _make_kernel(filter_sizes, S, F, b_tile)
    grid = (B // b_tile,)

    out = pl.pallas_call(
        kernel,
        out_shape=jax.ShapeDtypeStruct((B, O_pad), jnp.float32),
        grid_spec=pltpu.PrefetchScalarGridSpec(
            num_scalar_prefetch=0,
            grid=grid,
            in_specs=[
                pl.BlockSpec((b_tile, S, E), lambda i: (i, 0, 0)),   # activations
                pl.BlockSpec((E, NT * F), lambda i: (0, 0)),         # packed conv W
                pl.BlockSpec((n_fs, F), lambda i: (0, 0)),           # conv biases
                pl.BlockSpec((n_fs * F, O_pad), lambda i: (0, 0)),   # fc weight
                pl.BlockSpec((1, O_pad), lambda i: (0, 0)),          # fc bias
            ],
            out_specs=pl.BlockSpec((b_tile, O_pad), lambda i: (i, 0)),
        ),
        compiler_params=pltpu.CompilerParams(
            dimension_semantics=("parallel",),
            vmem_limit_bytes=64 * 1024 * 1024,
        ),
    )(embedded, w_all, b_all, fcw, fcb)

    return out[:, :O]


# -----------------------------------------------------------------------------
# Deterministic parameter construction (synthetic weights, not a checkpoint)
# -----------------------------------------------------------------------------
def init_params(key, vocab_size, embedding_dim, n_filters, filter_sizes, output_dim):
    keys = jax.random.split(key, 2 + 2 * len(filter_sizes) + 2)
    ki = iter(keys)
    params = {}
    params["embedding"] = 0.1 * jax.random.normal(
        next(ki), (vocab_size, embedding_dim), jnp.float32
    )
    for fs in filter_sizes:
        # PyTorch Conv2d weight is (n_filters, 1, fs, E); stored here as
        # (fs, E, n_filters) which is the transposed matmul form.
        params[f"conv{fs}_w"] = 0.1 * jax.random.normal(
            next(ki), (fs, embedding_dim, n_filters), jnp.float32
        )
        params[f"conv{fs}_b"] = 0.1 * jax.random.normal(
            next(ki), (1, n_filters), jnp.float32
        )
    # PyTorch Linear weight is (output_dim, in_features); stored transposed.
    params["fc_w"] = 0.1 * jax.random.normal(
        next(ki), (len(filter_sizes) * n_filters, output_dim), jnp.float32
    )
    params["fc_b"] = 0.1 * jax.random.normal(next(ki), (1, output_dim), jnp.float32)
    return params


# -----------------------------------------------------------------------------
# Pure-JAX reference (same bf16-quantized inputs, f32 math) for correctness
# -----------------------------------------------------------------------------
def reference_forward(text, params, filter_sizes):
    emb_table = params["embedding"].astype(jnp.bfloat16).astype(jnp.float32)
    embedded = jnp.take(emb_table, text, axis=0)                    # (B, S, E)
    S = embedded.shape[1]
    pooled = []
    for fs in filter_sizes:
        w = params[f"conv{fs}_w"].astype(jnp.bfloat16).astype(jnp.float32)
        b = params[f"conv{fs}_b"]
        L = S - fs + 1
        acc = sum(
            jnp.einsum("btd,df->btf", embedded[:, j:j + L, :], w[j],
                       precision=lax.Precision.HIGHEST)
            for j in range(fs)
        ) + b
        acc = jnp.maximum(acc, 0.0)
        pooled.append(jnp.max(acc, axis=1))
    cat = jnp.concatenate(pooled, axis=-1)
    return jnp.dot(cat, params["fc_w"],
                   precision=lax.Precision.HIGHEST) + params["fc_b"]


if __name__ == "__main__":
    # Small, forward-consistent shapes. B=16 with B_TILE=8 exercises the grid.
    vocab_size = 50
    embedding_dim = 32
    n_filters = 16
    filter_sizes = (2, 3, 4)
    output_dim = 4
    batch, seq = 16, 16

    key = jax.random.PRNGKey(0)
    k_params, k_text = jax.random.split(key)
    params = init_params(
        k_params, vocab_size, embedding_dim, n_filters, filter_sizes, output_dim
    )
    text = jax.random.randint(k_text, (batch, seq), 0, vocab_size, dtype=jnp.int32)

    logits = cnn_classifier_forward(text, params, filter_sizes, b_tile=8)
    logits = jax.block_until_ready(logits)

    ref = reference_forward(text, params, filter_sizes)
    assert logits.shape == (batch, output_dim)
    assert jnp.allclose(logits, ref, atol=1e-3, rtol=1e-3), "mismatch vs reference"

    print("KERNEL_OK")
</pallas_src>

<mosaic_0001>
module attributes {stable_mosaic.version = 11 : i64} {
  func.func @kernel(%arg0: i32, %arg1: memref<8x16x32xbf16, #tpu.memory_space<vmem>>, %arg2: memref<32x144xbf16, #tpu.memory_space<vmem>>, %arg3: memref<3x16xf32, #tpu.memory_space<vmem>>, %arg4: memref<48x128xf32, #tpu.memory_space<vmem>>, %arg5: memref<1x128xf32, #tpu.memory_space<vmem>>, %arg6: memref<8x128xf32, #tpu.memory_space<vmem>>) attributes {dimension_semantics = [#tpu.dimension_semantics<parallel>], iteration_bounds = array<i64: 2>, scalar_prefetch = 0 : i64, scratch_operands = 0 : i64, tpu.core_type = #tpu.core_type<tc>, window_params = [{transform_indices = @transform_0, window_bounds = array<i64: 8, 16, 32>}, {pipeline_mode = #tpu.pipeline_mode<synchronous>, transform_indices = @transform_1, window_bounds = array<i64: 32, 144>}, {pipeline_mode = #tpu.pipeline_mode<synchronous>, transform_indices = @transform_2, window_bounds = array<i64: 3, 16>}, {pipeline_mode = #tpu.pipeline_mode<synchronous>, transform_indices = @transform_3, window_bounds = array<i64: 48, 128>}, {pipeline_mode = #tpu.pipeline_mode<synchronous>, transform_indices = @transform_4, window_bounds = array<i64: 1, 128>}, {transform_indices = @transform_5, window_bounds = array<i64: 8, 128>}]} {
    %c0 = arith.constant 0 : index
    %c0_0 = arith.constant 0 : index
    %c0_1 = arith.constant 0 : index
    %0 = vector.load %arg1[%c0, %c0_0, %c0_1] : memref<8x16x32xbf16, #tpu.memory_space<vmem>>, vector<8x16x32xbf16>
    %1 = vector.shape_cast %0 : vector<8x16x32xbf16> to vector<128x32xbf16>
    %c0_2 = arith.constant 0 : index
    %c0_3 = arith.constant 0 : index
    %2 = vector.load %arg2[%c0_2, %c0_3] : memref<32x144xbf16, #tpu.memory_space<vmem>>, vector<32x144xbf16>
    %cst = arith.constant dense<0.000000e+00> : vector<128x144xf32>
    %3 = tpu.matmul %1, %2, %cst {dimension_numbers = #tpu.dot_dimension_numbers<[1], [0], [0], [1], [0, 0, 1, 1], [], []>} : vector<128x32xbf16>, vector<32x144xbf16>, vector<128x144xf32> -> vector<128x144xf32>
    %c127_i32 = arith.constant 127 : i32
    %4 = tpu.dynamic_rotate %3 by %c127_i32 dim 0 : vector<128x144xf32>, i32 -> vector<128x144xf32>
    %c126_i32 = arith.constant 126 : i32
    %5 = tpu.dynamic_rotate %3 by %c126_i32 dim 0 : vector<128x144xf32>, i32 -> vector<128x144xf32>
    %c125_i32 = arith.constant 125 : i32
    %6 = tpu.dynamic_rotate %3 by %c125_i32 dim 0 : vector<128x144xf32>, i32 -> vector<128x144xf32>
    %cst_4 = arith.constant 0.000000e+00 : f32
    %7 = vector.broadcast %cst_4 : f32 to vector<8x128xf32>
    %8 = vector.extract_strided_slice %3 {offsets = [0, 0], sizes = [128, 16], strides = [1, 1]} : vector<128x144xf32> to vector<128x16xf32>
    %9 = vector.extract_strided_slice %4 {offsets = [0, 16], sizes = [128, 16], strides = [1, 1]} : vector<128x144xf32> to vector<128x16xf32>
    %10 = arith.addf %8, %9 : vector<128x16xf32>
    %c0_5 = arith.constant 0 : index
    %c0_6 = arith.constant 0 : index
    %11 = vector.load %arg3[%c0_5, %c0_6] : memref<3x16xf32, #tpu.memory_space<vmem>>, vector<3x16xf32>
    %12 = vector.extract_strided_slice %11 {offsets = [0, 0], sizes = [1, 16], strides = [1, 1]} : vector<3x16xf32> to vector<1x16xf32>
    %13 = vector.broadcast %12 : vector<1x16xf32> to vector<128x16xf32>
    %14 = arith.addf %10, %13 : vector<128x16xf32>
    %cst_7 = arith.constant 0.000000e+00 : f32
    %15 = vector.broadcast %cst_7 : f32 to vector<128x16xf32>
    %16 = arith.maximumf %14, %15 : vector<128x16xf32>
    %17 = vector.shape_cast %16 : vector<128x16xf32> to vector<8x16x16xf32>
    %18 = tpu.iota {dimensions = array<i32: 1>} : vector<8x16x16xi32>
    %c15_i32 = arith.constant 15 : i32
    %19 = vector.broadcast %c15_i32 : i32 to vector<8x16x16xi32>
    %20 = arith.cmpi slt, %18, %19 : vector<8x16x16xi32>
    %cst_8 = arith.constant 0.000000e+00 : f32
    %21 = vector.broadcast %cst_8 : f32 to vector<8x16x16xf32>
    %22 = arith.select %20, %17, %21 : vector<8x16x16xi1>, vector<8x16x16xf32>
    %cst_9 = arith.constant dense<0xFF800000> : vector<8x16xf32>
    %23 = vector.multi_reduction <maximumf>, %22, %cst_9 [1] : vector<8x16x16xf32> to vector<8x16xf32>
    %c0_10 = arith.constant 0 : index
    %c0_11 = arith.constant 0 : index
    %24 = vector.load %arg4[%c0_10, %c0_11] : memref<48x128xf32, #tpu.memory_space<vmem>>, vector<48x128xf32>
    %25 = vector.extract_strided_slice %24 {offsets = [0, 0], sizes = [16, 128], strides = [1, 1]} : vector<48x128xf32> to vector<16x128xf32>
    %cst_12 = arith.constant dense<0.000000e+00> : vector<8x128xf32>
    %26 = tpu.matmul %23, %25, %cst_12 {dimension_numbers = #tpu.dot_dimension_numbers<[1], [0], [0], [1], [0, 0, 1, 1], [], []>} : vector<8x16xf32>, vector<16x128xf32>, vector<8x128xf32> -> vector<8x128xf32>
    %27 = arith.addf %7, %26 : vector<8x128xf32>
    %28 = vector.extract_strided_slice %3 {offsets = [0, 32], sizes = [128, 16], strides = [1, 1]} : vector<128x144xf32> to vector<128x16xf32>
    %29 = vector.extract_strided_slice %4 {offsets = [0, 48], sizes = [128, 16], strides = [1, 1]} : vector<128x144xf32> to vector<128x16xf32>
    %30 = arith.addf %28, %29 : vector<128x16xf32>
    %31 = vector.extract_strided_slice %5 {offsets = [0, 64], sizes = [128, 16], strides = [1, 1]} : vector<128x144xf32> to vector<128x16xf32>
    %32 = arith.addf %30, %31 : vector<128x16xf32>
    %c0_13 = arith.constant 0 : index
    %c0_14 = arith.constant 0 : index
    %33 = vector.load %arg3[%c0_13, %c0_14] : memref<3x16xf32, #tpu.memory_space<vmem>>, vector<3x16xf32>
    %34 = vector.extract_strided_slice %33 {offsets = [1, 0], sizes = [1, 16], strides = [1, 1]} : vector<3x16xf32> to vector<1x16xf32>
    %35 = vector.broadcast %34 : vector<1x16xf32> to vector<128x16xf32>
    %36 = arith.addf %32, %35 : vector<128x16xf32>
    %cst_15 = arith.constant 0.000000e+00 : f32
    %37 = vector.broadcast %cst_15 : f32 to vector<128x16xf32>
    %38 = arith.maximumf %36, %37 : vector<128x16xf32>
    %39 = vector.shape_cast %38 : vector<128x16xf32> to vector<8x16x16xf32>
    %40 = tpu.iota {dimensions = array<i32: 1>} : vector<8x16x16xi32>
    %c14_i32 = arith.constant 14 : i32
    %41 = vector.broadcast %c14_i32 : i32 to vector<8x16x16xi32>
    %42 = arith.cmpi slt, %40, %41 : vector<8x16x16xi32>
    %cst_16 = arith.constant 0.000000e+00 : f32
    %43 = vector.broadcast %cst_16 : f32 to vector<8x16x16xf32>
    %44 = arith.select %42, %39, %43 : vector<8x16x16xi1>, vector<8x16x16xf32>
    %cst_17 = arith.constant dense<0xFF800000> : vector<8x16xf32>
    %45 = vector.multi_reduction <maximumf>, %44, %cst_17 [1] : vector<8x16x16xf32> to vector<8x16xf32>
    %c0_18 = arith.constant 0 : index
    %c0_19 = arith.constant 0 : index
    %46 = vector.load %arg4[%c0_18, %c0_19] : memref<48x128xf32, #tpu.memory_space<vmem>>, vector<48x128xf32>
    %47 = vector.extract_strided_slice %46 {offsets = [16, 0], sizes = [16, 128], strides = [1, 1]} : vector<48x128xf32> to vector<16x128xf32>
    %cst_20 = arith.constant dense<0.000000e+00> : vector<8x128xf32>
    %48 = tpu.matmul %45, %47, %cst_20 {dimension_numbers = #tpu.dot_dimension_numbers<[1], [0], [0], [1], [0, 0, 1, 1], [], []>} : vector<8x16xf32>, vector<16x128xf32>, vector<8x128xf32> -> vector<8x128xf32>
    %49 = arith.addf %27, %48 : vector<8x128xf32>
    %50 = vector.extract_strided_slice %3 {offsets = [0, 80], sizes = [128, 16], strides = [1, 1]} : vector<128x144xf32> to vector<128x16xf32>
    %51 = vector.extract_strided_slice %4 {offsets = [0, 96], sizes = [128, 16], strides = [1, 1]} : vector<128x144xf32> to vector<128x16xf32>
    %52 = arith.addf %50, %51 : vector<128x16xf32>
    %53 = vector.extract_strided_slice %5 {offsets = [0, 112], sizes = [128, 16], strides = [1, 1]} : vector<128x144xf32> to vector<128x16xf32>
    %54 = arith.addf %52, %53 : vector<128x16xf32>
    %55 = vector.extract_strided_slice %6 {offsets = [0, 128], sizes = [128, 16], strides = [1, 1]} : vector<128x144xf32> to vector<128x16xf32>
    %56 = arith.addf %54, %55 : vector<128x16xf32>
    %c0_21 = arith.constant 0 : index
    %c0_22 = arith.constant 0 : index
    %57 = vector.load %arg3[%c0_21, %c0_22] : memref<3x16xf32, #tpu.memory_space<vmem>>, vector<3x16xf32>
    %58 = vector.extract_strided_slice %57 {offsets = [2, 0], sizes = [1, 16], strides = [1, 1]} : vector<3x16xf32> to vector<1x16xf32>
    %59 = vector.broadcast %58 : vector<1x16xf32> to vector<128x16xf32>
    %60 = arith.addf %56, %59 : vector<128x16xf32>
    %cst_23 = arith.constant 0.000000e+00 : f32
    %61 = vector.broadcast %cst_23 : f32 to vector<128x16xf32>
    %62 = arith.maximumf %60, %61 : vector<128x16xf32>
    %63 = vector.shape_cast %62 : vector<128x16xf32> to vector<8x16x16xf32>
    %64 = tpu.iota {dimensions = array<i32: 1>} : vector<8x16x16xi32>
    %c13_i32 = arith.constant 13 : i32
    %65 = vector.broadcast %c13_i32 : i32 to vector<8x16x16xi32>
    %66 = arith.cmpi slt, %64, %65 : vector<8x16x16xi32>
    %cst_24 = arith.constant 0.000000e+00 : f32
    %67 = vector.broadcast %cst_24 : f32 to vector<8x16x16xf32>
    %68 = arith.select %66, %63, %67 : vector<8x16x16xi1>, vector<8x16x16xf32>
    %cst_25 = arith.constant dense<0xFF800000> : vector<8x16xf32>
    %69 = vector.multi_reduction <maximumf>, %68, %cst_25 [1] : vector<8x16x16xf32> to vector<8x16xf32>
    %c0_26 = arith.constant 0 : index
    %c0_27 = arith.constant 0 : index
    %70 = vector.load %arg4[%c0_26, %c0_27] : memref<48x128xf32, #tpu.memory_space<vmem>>, vector<48x128xf32>
    %71 = vector.extract_strided_slice %70 {offsets = [32, 0], sizes = [16, 128], strides = [1, 1]} : vector<48x128xf32> to vector<16x128xf32>
    %cst_28 = arith.constant dense<0.000000e+00> : vector<8x128xf32>
    %72 = tpu.matmul %69, %71, %cst_28 {dimension_numbers = #tpu.dot_dimension_numbers<[1], [0], [0], [1], [0, 0, 1, 1], [], []>} : vector<8x16xf32>, vector<16x128xf32>, vector<8x128xf32> -> vector<8x128xf32>
    %73 = arith.addf %49, %72 : vector<8x128xf32>
    %c0_29 = arith.constant 0 : index
    %c0_30 = arith.constant 0 : index
    %74 = vector.load %arg5[%c0_29, %c0_30] : memref<1x128xf32, #tpu.memory_space<vmem>>, vector<1x128xf32>
    %75 = vector.broadcast %74 : vector<1x128xf32> to vector<8x128xf32>
    %76 = arith.addf %73, %75 : vector<8x128xf32>
    %c0_31 = arith.constant 0 : index
    %c0_32 = arith.constant 0 : index
    %77 = vector.load %arg6[%c0_31, %c0_32] : memref<8x128xf32, #tpu.memory_space<vmem>>, vector<8x128xf32>
    tpu.vector_store %arg6[%c0_31, %c0_32], %76 {strides = array<i32>} : memref<8x128xf32, #tpu.memory_space<vmem>>, vector<8x128xf32>,
    return
  }
  func.func @transform_0(%arg0: i32) -> (i32, i32, i32) {
    %c0_i32 = arith.constant 0 : i32
    %c0_i32_0 = arith.constant 0 : i32
    %c0_i32_1 = arith.constant 0 : i32
    return %arg0, %c0_i32, %c0_i32_0 : i32, i32, i32
  }
  func.func @transform_1(%arg0: i32) -> (i32, i32) {
    %c0_i32 = arith.constant 0 : i32
    %c0_i32_0 = arith.constant 0 : i32
    %c0_i32_1 = arith.constant 0 : i32
    return %c0_i32, %c0_i32_0 : i32, i32
  }
  func.func @transform_2(%arg0: i32) -> (i32, i32) {
    %c0_i32 = arith.constant 0 : i32
    %c0_i32_0 = arith.constant 0 : i32
    %c0_i32_1 = arith.constant 0 : i32
    return %c0_i32, %c0_i32_0 : i32, i32
  }
  func.func @transform_3(%arg0: i32) -> (i32, i32) {
    %c0_i32 = arith.constant 0 : i32
    %c0_i32_0 = arith.constant 0 : i32
    %c0_i32_1 = arith.constant 0 : i32
    return %c0_i32, %c0_i32_0 : i32, i32
  }
  func.func @transform_4(%arg0: i32) -> (i32, i32) {
    %c0_i32 = arith.constant 0 : i32
    %c0_i32_0 = arith.constant 0 : i32
    %c0_i32_1 = arith.constant 0 : i32
    return %c0_i32, %c0_i32_0 : i32, i32
  }
  func.func @transform_5(%arg0: i32) -> (i32, i32) {
    %c0_i32 = arith.constant 0 : i32
    %c0_i32_0 = arith.constant 0 : i32
    return %arg0, %c0_i32 : i32, i32
  }
}

</mosaic_0001>

<llo_original>
// kernel: tpu_custom_call.1
$region0: #{tpu_custom_call.1}
  #allocation0 [shape = 'u32[]', space=smem, size = 0x4, offset = 0x4, fixed_abs, tag = 'smem constant byte address 0x4 - core index']
  #allocation1 [shape = 'u32[144,128]{1,0:T(1,128)}', space=vmem, size = 0x12000, scoped, tag = 'internal scratch']
  %s0 = inlined_call_operand.hbm [shape: bf16[16,16,32], index: 0, kind: input, shape index: {}]
  %s1 = inlined_call_operand.hbm [shape: bf16[32,144], index: 1, kind: input, shape index: {}]
  %s2 = inlined_call_operand.hbm [shape: f32[3,16], index: 2, kind: input, shape index: {}]
  %s3 = inlined_call_operand.hbm [shape: f32[48,128], index: 3, kind: input, shape index: {}]
  %s4 = inlined_call_operand.hbm [shape: f32[1,128], index: 4, kind: input, shape index: {}]
  %s5 = inlined_call_operand.hbm [shape: f32[16,128], index: 5, kind: output, shape index: {}]
  %s6 = sld [smem:[#allocation0]]
  $region73: #{tpu_custom_call.1} parent=0
    _
  %s8 = ssub.s32 1, %s6
  %s9 = scalar_select 0, %s8, %s6
  $region1: #{tpu_custom_call.1} parent=0
    #allocation2 [shape = 'u8[65536]{0}', space=vmem, size = 0x10000, scoped, tag = 'input window, operand 0']
    #allocation3 [shape = 's32[2]{0}', space=sflag, size = 0x8, scoped, tag = 'scoped memory for tpu_custom_call.1']
    #allocation4 [shape = 's32[2]{0}', space=sflag, size = 0x8, scoped, tag = 'scoped memory for tpu_custom_call.1']
    #allocation5 [shape = 'u8[16384]{0}', space=vmem, size = 0x4000, scoped, tag = 'input window, operand 1, single buffered']
    #allocation6 [shape = 's32[1]{0}', space=sflag, size = 0x4, scoped, tag = 'scoped memory for tpu_custom_call.1']
    #allocation7 [shape = 'u8[2048]{0}', space=vmem, size = 0x800, scoped, tag = 'input window, operand 2, single buffered']
    #allocation8 [shape = 'u8[24576]{0}', space=vmem, size = 0x6000, scoped, tag = 'input window, operand 3, single buffered']
    #allocation9 [shape = 's32[1]{0}', space=sflag, size = 0x4, scoped, tag = 'scoped memory for tpu_custom_call.1']
    #allocation10 [shape = 'u8[512]{0}', space=vmem, size = 0x400, scoped, tag = 'input window, operand 4, single buffered']
    #allocation11 [shape = 'u8[8192]{0}', space=vmem, size = 0x2000, scoped, tag = 'output window, operand 0']
    %10 = vsyncpa [#allocation3], 0
    %s11 = scalar_lea.sflag [#allocation3], 1
    %12 = vsyncpa %s11, 0
    %13 = vsyncpa [#allocation6], 0
    %14 = vsyncpa [#allocation9], 0
    %15 = vsyncpa [#allocation4], 0
    %s16 = scalar_lea.sflag [#allocation4], 1
    %17 = vsyncpa %s16, 0
    loop: start=0, step=1, limit=4
    $region2: #{tpu_custom_call.1} parent=1 // loop_pre_header
      _
    $region3: #{tpu_custom_call.1} parent=1 // loop_header
      %s19 = sphi 0, %s23
      %p20 = scmp.ge.s32.totalorder %s19, 4
      %s29 = sphi 0, %s31
      %s32 = sphi 0, %s29
      %s33 = sphi 0, %s32
      %s49 = sphi 0, %s33
      %s53 = sphi 0, %s53
      %s55 = sphi 0, %s53
      %s56 = sphi 0, %s55
      %s70 = sphi 0, %s56
      %s74 = sphi 0, %s74
      %s76 = sphi 0, %s74
      %s77 = sphi 0, %s76
      %s91 = sphi 0, %s77
      %s95 = sphi 0, %s95
      %s97 = sphi 0, %s95
      %s98 = sphi 0, %s97
      %s112 = sphi 0, %s98
      %s116 = sphi 0, %s116
      %s118 = sphi 0, %s116
      %s119 = sphi 0, %s118
      %s133 = sphi 0, %s119
      %s139 = sphi 0, %s141
      %s142 = sphi 0, %s139
      %s143 = sphi 0, %s142
      %s159 = sphi 0, %s143
    $region4: #{tpu_custom_call.1} parent=1 // loop_header_branch
      %22 = sbr.rel (%p20) target = $region8
    $region5: #{tpu_custom_call.1} parent=1 // loop_body
      %s24 = ssub.s32 %s19, 1
      %s25 = ssub.s32 %s19, 2
      %s26 = sadd.s32 %s19, 1
      %s27 = ssub.s32 %s19, %s26
      %p28 = scmp.eq.s32.totalorder %s27, 0
      %s30 = sadd.s32 %s29, 1
      %s31 = scalar_select %p28, %s29, %s30
      %p34 = pneg %p28
      %p35 = scmp.eq.s32.totalorder %s19, 1
      %p36 = por %p34, %p35
      %p37 = scmp.ne.s32.totalorder %s29, %s32
      %p38 = scmp.eq.s32.totalorder %s19, 0
      %p39 = por %p37, %p38
      %p40 = scmp.ne.s32.totalorder %s29, %s32
      %p41 = scmp.eq.s32.totalorder %s24, 1
      %p42 = por %p40, %p41
      %p43 = scmp.ne.s32.totalorder %s32, %s33
      %p44 = scmp.eq.s32.totalorder %s24, 0
      %p45 = por %p43, %p44
      %p46 = scmp.ne.s32.totalorder %s32, %s33
      %p47 = scmp.eq.s32.totalorder %s25, 1
      %p48 = por %p46, %p47
      %p50 = scmp.ne.s32.totalorder %s33, %s49
      %p51 = scmp.eq.s32.totalorder %s25, 0
      %p52 = por %p50, %p51
      %s54 = sadd.s32 %s53, 1
      %p57 = scmp.eq.s32.totalorder %s19, 1
      %p58 = scmp.ne.s32.totalorder %s53, %s55
      %p59 = scmp.eq.s32.totalorder %s19, 0
      %p60 = por %p58, %p59
      %p61 = scmp.ne.s32.totalorder %s53, %s55
      %p62 = scmp.eq.s32.totalorder %s24, 1
      %p63 = por %p61, %p62
      %p64 = scmp.ne.s32.totalorder %s55, %s56
      %p65 = scmp.eq.s32.totalorder %s24, 0
      %p66 = por %p64, %p65
      %p67 = scmp.ne.s32.totalorder %s55, %s56
      %p68 = scmp.eq.s32.totalorder %s25, 1
      %p69 = por %p67, %p68
      %p71 = scmp.ne.s32.totalorder %s56, %s70
      %p72 = scmp.eq.s32.totalorder %s25, 0
      %p73 = por %p71, %p72
      %s75 = sadd.s32 %s74, 1
      %p78 = scmp.eq.s32.totalorder %s19, 1
      %p79 = scmp.ne.s32.totalorder %s74, %s76
      %p80 = scmp.eq.s32.totalorder %s19, 0
      %p81 = por %p79, %p80
      %p82 = scmp.ne.s32.totalorder %s74, %s76
      %p83 = scmp.eq.s32.totalorder %s24, 1
      %p84 = por %p82, %p83
      %p85 = scmp.ne.s32.totalorder %s76, %s77
      %p86 = scmp.eq.s32.totalorder %s24, 0
      %p87 = por %p85, %p86
      %p88 = scmp.ne.s32.totalorder %s76, %s77
      %p89 = scmp.eq.s32.totalorder %s25, 1
      %p90 = por %p88, %p89
      %p92 = scmp.ne.s32.totalorder %s77, %s91
      %p93 = scmp.eq.s32.totalorder %s25, 0
      %p94 = por %p92, %p93
      %s96 = sadd.s32 %s95, 1
      %p99 = scmp.eq.s32.totalorder %s19, 1
      %p100 = scmp.ne.s32.totalorder %s95, %s97
      %p101 = scmp.eq.s32.totalorder %s19, 0
      %p102 = por %p100, %p101
      %p103 = scmp.ne.s32.totalorder %s95, %s97
      %p104 = scmp.eq.s32.totalorder %s24, 1
      %p105 = por %p103, %p104
      %p106 = scmp.ne.s32.totalorder %s97, %s98
      %p107 = scmp.eq.s32.totalorder %s24, 0
      %p108 = por %p106, %p107
      %p109 = scmp.ne.s32.totalorder %s97, %s98
      %p110 = scmp.eq.s32.totalorder %s25, 1
      %p111 = por %p109, %p110
      %p113 = scmp.ne.s32.totalorder %s98, %s112
      %p114 = scmp.eq.s32.totalorder %s25, 0
      %p115 = por %p113, %p114
      %s117 = sadd.s32 %s116, 1
      %p120 = scmp.eq.s32.totalorder %s19, 1
      %p121 = scmp.ne.s32.totalorder %s116, %s118
      %p122 = scmp.eq.s32.totalorder %s19, 0
      %p123 = por %p121, %p122
      %p124 = scmp.ne.s32.totalorder %s116, %s118
      %p125 = scmp.eq.s32.totalorder %s24, 1
      %p126 = por %p124, %p125
      %p127 = scmp.ne.s32.totalorder %s118, %s119
      %p128 = scmp.eq.s32.totalorder %s24, 0
      %p129 = por %p127, %p128
      %p130 = scmp.ne.s32.totalorder %s118, %s119
      %p131 = scmp.eq.s32.totalorder %s25, 1
      %p132 = por %p130, %p131
      %p134 = scmp.ne.s32.totalorder %s119, %s133
      %p135 = scmp.eq.s32.totalorder %s25, 0
      %p136 = por %p134, %p135
      %s137 = ssub.s32 %s19, %s26
      %p138 = scmp.eq.s32.totalorder %s137, 0
      %s140 = sadd.s32 %s139, 1
      %s141 = scalar_select %p138, %s139, %s140
      %p144 = pneg %p138
      %p145 = scmp.eq.s32.totalorder %s19, 1
      %p146 = por %p144, %p145
      %p147 = scmp.ne.s32.totalorder %s139, %s142
      %p148 = scmp.eq.s32.totalorder %s19, 0
      %p149 = por %p147, %p148
      %p150 = scmp.ne.s32.totalorder %s139, %s142
      %p151 = scmp.eq.s32.totalorder %s24, 1
      %p152 = por %p150, %p151
      %p153 = scmp.ne.s32.totalorder %s142, %s143
      %p154 = scmp.eq.s32.totalorder %s24, 0
      %p155 = por %p153, %p154
      %p156 = scmp.ne.s32.totalorder %s142, %s143
      %p157 = scmp.eq.s32.totalorder %s25, 1
      %p158 = por %p156, %p157
      %p160 = scmp.ne.s32.totalorder %s143, %s159
      %p161 = scmp.eq.s32.totalorder %s25, 0
      %p162 = por %p160, %p161
      %p163 = scmp.le.s32.totalorder 1, %s19
      %p164 = scmp.lt.s32.totalorder %s19, 3
      %p165 = pnand %p163, %p164
      %p166 = pneg %p165
      // Predicated region
      $region9: #{tpu_custom_call.1} parent=5 // pred_check
        _
      $region10: #{tpu_custom_call.1} parent=5 // pred_check_branch
        %168 = sbr.rel (%p165) target = $region12
      $region11: #{tpu_custom_call.1} parent=5 // pred_region
        %s169 = ssub.s32 %s19, 1
        // Predicated region
        $region13: #{tpu_custom_call.1} parent=11 // pred_check
          %p170 = pneg %p66
        $region14: #{tpu_custom_call.1} parent=11 // pred_check_branch
          %172 = sbr.rel (%p170) target = $region16
        $region15: #{tpu_custom_call.1} parent=11 // pred_region
          %s174 = ssub.s32 512, 512
          %175 = vsyncadd [#allocation6], %s174
          %s176 = sshll.u32 [#allocation5], 4
          %s177 = int_to_ptr.vmem [resolvable:$true] %s176
          %182 = dma.hbm_to_vmem [thread:$0]  %s1, 512, %s177, [#allocation6], 128, 128, 8
        $region16: #{tpu_custom_call.1} parent=11 // pred_fallthru
          _
        // Predicated region
        $region17: #{tpu_custom_call.1} parent=11 // pred_check
          %p183 = pneg %p87
        $region18: #{tpu_custom_call.1} parent=11 // pred_check_branch
          %185 = sbr.rel (%p183) target = $region20
        $region19: #{tpu_custom_call.1} parent=11 // pred_region
          %s187 = ssub.s32 64, 64
          %188 = vsyncadd [#allocation6], %s187
          %s190 = sshll.u32 [#allocation7], 4
          %s191 = int_to_ptr.vmem [resolvable:$true] %s190
          %193 = dma.hbm_to_vmem [thread:$0]  %s2, 64, %s191, [#allocation6]
        $region20: #{tpu_custom_call.1} parent=11 // pred_fallthru
          _
        // Predicated region
        $region21: #{tpu_custom_call.1} parent=11 // pred_check
          %p194 = pneg %p108
        $region22: #{tpu_custom_call.1} parent=11 // pred_check_branch
          %196 = sbr.rel (%p194) target = $region24
        $region23: #{tpu_custom_call.1} parent=11 // pred_region
          %s198 = ssub.s32 768, 768
          %199 = vsyncadd [#allocation9], %s198
          %s200 = sshll.u32 [#allocation8], 4
          %s201 = int_to_ptr.vmem [resolvable:$true] %s200
          %206 = dma.hbm_to_vmem [thread:$0]  %s3, 768, %s201, [#allocation9], 128, 128, 8
        $region24: #{tpu_custom_call.1} parent=11 // pred_fallthru
          _
        // Predicated region
        $region25: #{tpu_custom_call.1} parent=11 // pred_check
          %p207 = pneg %p129
        $region26: #{tpu_custom_call.1} parent=11 // pred_check_branch
          %209 = sbr.rel (%p207) target = $region28
        $region27: #{tpu_custom_call.1} parent=11 // pred_region
          %s211 = ssub.s32 16, 16
          %212 = vsyncadd [#allocation9], %s211
          %s214 = sshll.u32 [#allocation10], 4
          %s215 = int_to_ptr.vmem [resolvable:$true] %s214
          %217 = dma.hbm_to_vmem [thread:$0]  %s4, 16, %s215, [#allocation9]
        $region28: #{tpu_custom_call.1} parent=11 // pred_fallthru
          _
      $region12: #{tpu_custom_call.1} parent=5 // pred_fallthru
        _
      %p218 = scmp.lt.s32.totalorder %s19, 2
      // Predicated region
      $region29: #{tpu_custom_call.1} parent=5 // pred_check
        %p219 = pneg %p218
      $region30: #{tpu_custom_call.1} parent=5 // pred_check_branch
        %221 = sbr.rel (%p219) target = $region32
      $region31: #{tpu_custom_call.1} parent=5 // pred_region
        // Predicated region
        $region33: #{tpu_custom_call.1} parent=31 // pred_check
          %p222 = pneg %p39
        $region34: #{tpu_custom_call.1} parent=31 // pred_check_branch
          %224 = sbr.rel (%p222) target = $region36
        $region35: #{tpu_custom_call.1} parent=31 // pred_region
          %s225 = sand.u32 %s29, 1
          %s226 = scalar_lea.sflag [#allocation3], %s225
          %s227 = sand.u32 %s29, 1
          %s228 = smul.addr %s227, 64
          %s229 = scalar_lea.vmem [#allocation2], %s228
          %s230 = smul.u32 8, %s19
          %s232 = ssub.s32 1024, 1024
          %233 = vsyncadd %s226, %s232
          %s234 = smul.addr %s230, 2
          %s235 = smul.addr %s234, 64
          %s236 = scalar_lea.hbm %s0, %s235
          %s237 = sshll.u32 %s229, 4
          %s238 = int_to_ptr.vmem [resolvable:$true] %s237
          %243 = dma.hbm_to_vmem [thread:$0]  %s236, 1024, %s238, %s226, 64, 64, 4
        $region36: #{tpu_custom_call.1} parent=31 // pred_fallthru
          _
      $region32: #{tpu_custom_call.1} parent=5 // pred_fallthru
        _
      %p244 = scmp.le.s32.totalorder 1, %s19
      %p245 = scmp.lt.s32.totalorder %s19, 3
      %p246 = pnand %p244, %p245
      %p247 = pneg %p246
      // Predicated region
      $region37: #{tpu_custom_call.1} parent=5 // pred_check
        _
      $region38: #{tpu_custom_call.1} parent=5 // pred_check_branch
        %249 = sbr.rel (%p246) target = $region40
      $region39: #{tpu_custom_call.1} parent=5 // pred_region
        %s250 = ssub.s32 %s19, 1
        %s251 = sand.u32 %s32, 1
        %s252 = scalar_lea.sflag [#allocation3], %s251
        %s253 = sand.u32 %s32, 1
        %s254 = smul.addr %s253, 64
        %s255 = scalar_lea.vmem [#allocation2], %s254
        // Predicated region
        $region41: #{tpu_custom_call.1} parent=39 // pred_check
          %p256 = pneg %p45
        $region42: #{tpu_custom_call.1} parent=39 // pred_check_branch
          %258 = sbr.rel (%p256) target = $region44
        $region43: #{tpu_custom_call.1} parent=39 // pred_region
          %259 = dma.done %s252, 1024
        $region44: #{tpu_custom_call.1} parent=39 // pred_fallthru
          _
        // Predicated region
        $region45: #{tpu_custom_call.1} parent=39 // pred_check
          %p260 = pneg %p66
        $region46: #{tpu_custom_call.1} parent=39 // pred_check_branch
          %262 = sbr.rel (%p260) target = $region48
        $region47: #{tpu_custom_call.1} parent=39 // pred_region
          %263 = dma.done [#allocation6], 512
        $region48: #{tpu_custom_call.1} parent=39 // pred_fallthru
          _
        // Predicated region
        $region49: #{tpu_custom_call.1} parent=39 // pred_check
          %p264 = pneg %p87
        $region50: #{tpu_custom_call.1} parent=39 // pred_check_branch
          %266 = sbr.rel (%p264) target = $region52
        $region51: #{tpu_custom_call.1} parent=39 // pred_region
          %267 = dma.done [#allocation6], 64
        $region52: #{tpu_custom_call.1} parent=39 // pred_fallthru
          _
        // Predicated region
        $region53: #{tpu_custom_call.1} parent=39 // pred_check
          %p268 = pneg %p108
        $region54: #{tpu_custom_call.1} parent=39 // pred_check_branch
          %270 = sbr.rel (%p268) target = $region56
        $region55: #{tpu_custom_call.1} parent=39 // pred_region
          %271 = dma.done [#allocation9], 768
        $region56: #{tpu_custom_call.1} parent=39 // pred_fallthru
          _
        // Predicated region
        $region57: #{tpu_custom_call.1} parent=39 // pred_check
          %p272 = pneg %p129
        $region58: #{tpu_custom_call.1} parent=39 // pred_check_branch
          %274 = sbr.rel (%p272) target = $region60
        $region59: #{tpu_custom_call.1} parent=39 // pred_region
          %275 = dma.done [#allocation9], 16
        $region60: #{tpu_custom_call.1} parent=39 // pred_fallthru
          _
        %s276 = sand.u32 %s32, 1
        %s277 = scalar_lea.sflag [#allocation3], %s276
        %s278 = sand.u32 %s32, 1
        %s279 = smul.addr %s278, 64
        %s280 = scalar_lea.vmem [#allocation2], %s279
        %p281 = pneg %p45
        %p282 = pneg %p42
        %p283 = pneg %p66
        %p284 = pneg %p63
        %p285 = pneg %p87
        %p286 = pneg %p84
        %p287 = pneg %p108
        %p288 = pneg %p105
        %p289 = pneg %p129
        %p290 = pneg %p126
        %p291 = pneg %p155
        %p292 = pneg %p152
        %s293 = sand.u32 %s142, 1
        %s294 = scalar_lea.sflag [#allocation4], %s293
        %s295 = sand.u32 %s142, 1
        %s296 = smul.addr %s295, 8
        %s297 = scalar_lea.vmem [#allocation11], %s296
        %s298 = smul.u32 8, %s24
        %v300 = vld [vmem:[%s255] sm:$0xf]
        %v301 = vld [vmem:[%s255 + $0x4] sm:$0xf]
        %v302 = vld [vmem:[%s255 + $0x8] sm:$0xf]
        %v303 = vld [vmem:[%s255 + $0xc] sm:$0xf]
        %v304 = vld [vmem:[%s255 + $0x10] sm:$0xf]
        %v305 = vld [vmem:[%s255 + $0x14] sm:$0xf]
        %v306 = vld [vmem:[%s255 + $0x18] sm:$0xf]
        %v307 = vld [vmem:[%s255 + $0x1c] sm:$0xf]
        %v308 = vld [vmem:[%s255 + $0x20] sm:$0xf]
        %v309 = vld [vmem:[%s255 + $0x24] sm:$0xf]
        %v310 = vld [vmem:[%s255 + $0x28] sm:$0xf]
        %v311 = vld [vmem:[%s255 + $0x2c] sm:$0xf]
        %v312 = vld [vmem:[%s255 + $0x30] sm:$0xf]
        %v313 = vld [vmem:[%s255 + $0x34] sm:$0xf]
        %v314 = vld [vmem:[%s255 + $0x38] sm:$0xf]
        %v315 = vld [vmem:[%s255 + $0x3c] sm:$0xf]
        %v316 = vld [vmem:[#allocation5] sm:$0xff]
        %v317 = vld [vmem:[#allocation5 + $0x8] sm:$0xff]
        %v318 = vld [vmem:[#allocation5 + $0x10] sm:$0xff]
        %v319 = vld [vmem:[#allocation5 + $0x18] sm:$0xff]
        %v336 = vunpack.c.l.b16 %v300
        %v337 = vunpack.c.l.b16 %v301
        %v338 = vunpack.c.l.b16 %v302
        %v339 = vunpack.c.l.b16 %v303
        %v340 = vunpack.c.l.b16 %v304
        %v341 = vunpack.c.l.b16 %v305
        %v342 = vunpack.c.l.b16 %v306
        %v343 = vunpack.c.l.b16 %v307
        %v344 = vunpack.c.l.b16 %v308
        %v345 = vunpack.c.l.b16 %v309
        %v346 = vunpack.c.l.b16 %v310
        %v347 = vunpack.c.l.b16 %v311
        %v348 = vunpack.c.l.b16 %v312
        %v349 = vunpack.c.l.b16 %v313
        %v350 = vunpack.c.l.b16 %v314
        %v351 = vunpack.c.l.b16 %v315
        %v352 = vpack.c.b16 %v337, %v336
        %v353 = vpack.c.b16 %v339, %v338
        %v354 = vpack.c.b16 %v341, %v340
        %v355 = vpack.c.b16 %v343, %v342
        %v356 = vpack.c.b16 %v345, %v344
        %v357 = vpack.c.b16 %v347, %v346
        %v358 = vpack.c.b16 %v349, %v348
        %v359 = vpack.c.b16 %v351, %v350
        %v364 = vunpack.c.l.b16 %v316
        %v365 = vunpack.c.h.b16 %v316
        %v366 = vunpack.c.l.b16 %v317
        %v367 = vunpack.c.h.b16 %v317
        %v368 = vunpack.c.l.b16 %v318
        %v369 = vunpack.c.h.b16 %v318
        %v370 = vunpack.c.l.b16 %v319
        %v371 = vunpack.c.h.b16 %v319
        %v372 = vpack.c.b16 %v366, %v364
        %v373 = vpack.c.b16 %v367, %v365
        %v374 = vpack.c.b16 %v370, %v368
        %v375 = vpack.c.b16 %v371, %v369
        %vm380 = vcmask 261120
        %v382 = vsel %vm380, %v352, 0
        %v385 = vsel %vm380, %v353, 0
        %v388 = vsel %vm380, %v354, 0
        %v391 = vsel %vm380, %v355, 0
        %v394 = vsel %vm380, %v356, 0
        %v397 = vsel %vm380, %v357, 0
        %v400 = vsel %vm380, %v358, 0
        %v403 = vsel %vm380, %v359, 0
        %405 = vmatprep.subr.bf16.mxu0 %v373
        %406 = vmatpush1.bf16.msra.mxu0 %v372
        %407 = vmatprep.subr.bf16.mxu0 %v375
        %408 = vmatpush1.bf16.msra.mxu0 %v374
        %409 = vmatprep.subr.bf16.mxu0 0
        %410 = vmatpush1.bf16.msra.mxu0 0
        %411 = vmatprep.subr.bf16.mxu0 0
        %412 = vmatpush1.bf16.msra.mxu0 0
        %413 = vmatprep.subr.bf16.mxu0 0
        %414 = vmatpush1.bf16.msra.mxu0 0
        %415 = vmatprep.subr.bf16.mxu0 0
        %416 = vmatpush1.bf16.msra.mxu0 0
        %417 = vmatprep.subr.bf16.mxu0 0
        %418 = vmatpush1.bf16.msra.mxu0 0
        %419 = vmatprep.subr.bf16.mxu0 0
        %420 = vmatpush1.bf16.msra.mxu0 0
        %421 = vmatprep.subr.bf16.mxu0 0
        %422 = vmatpush1.bf16.msra.mxu0 0
        %423 = vmatprep.subr.bf16.mxu0 0
        %424 = vmatpush1.bf16.msra.mxu0 0
        %425 = vmatprep.subr.bf16.mxu0 0
        %426 = vmatpush1.bf16.msra.mxu0 0
        %427 = vmatprep.subr.bf16.mxu0 0
        %428 = vmatpush1.bf16.msra.mxu0 0
        %429 = vmatprep.subr.bf16.mxu0 0
        %430 = vmatpush1.bf16.msra.mxu0 0
        %431 = vmatprep.subr.bf16.mxu0 0
        %432 = vmatpush1.bf16.msra.mxu0 0
        %433 = vmatprep.subr.bf16.mxu0 0
        %434 = vmatpush1.bf16.msra.mxu0 0
        %435 = vmatprep.subr.bf16.mxu0 0
        %436 = vmatpush1.bf16.msra.mxu0 0
        %437 = vmatprep.mubr.bf16.mxu0 0
        %438 = vmatmul.mubr.bf16.gmra.mrb[0].mxu0 %v382
        %v439 = vpop.f32.mrb[0].mxu0
        %v440 = vadd.f32 0.0, %v439
        %v441 = vpop.f32.mrb[0].mxu0
        %v442 = vadd.f32 0.0, %v441
        %v443 = vpop.f32.mrb[0].mxu0
        %v444 = vadd.f32 0.0, %v443
        %v445 = vpop.f32.mrb[0].mxu0
        %v446 = vadd.f32 0.0, %v445
        %447 = vmatprep.mubr.bf16.mxu0 0
        %448 = vmatmul.mubr.bf16.gmra.mrb[0].mxu0 %v385
        %v449 = vpop.f32.mrb[0].mxu0
        %v450 = vadd.f32 0.0, %v449
        %v451 = vpop.f32.mrb[0].mxu0
        %v452 = vadd.f32 0.0, %v451
        %v453 = vpop.f32.mrb[0].mxu0
        %v454 = vadd.f32 0.0, %v453
        %v455 = vpop.f32.mrb[0].mxu0
        %v456 = vadd.f32 0.0, %v455
        %457 = vmatprep.mubr.bf16.mxu0 0
        %458 = vmatmul.mubr.bf16.gmra.mrb[0].mxu0 %v388
        %v459 = vpop.f32.mrb[0].mxu0
        %v460 = vadd.f32 0.0, %v459
        %v461 = vpop.f32.mrb[0].mxu0
        %v462 = vadd.f32 0.0, %v461
        %v463 = vpop.f32.mrb[0].mxu0
        %v464 = vadd.f32 0.0, %v463
        %v465 = vpop.f32.mrb[0].mxu0
        %v466 = vadd.f32 0.0, %v465
        %467 = vmatprep.mubr.bf16.mxu0 0
        %468 = vmatmul.mubr.bf16.gmra.mrb[0].mxu0 %v391
        %v469 = vpop.f32.mrb[0].mxu0
        %v470 = vadd.f32 0.0, %v469
        %v471 = vpop.f32.mrb[0].mxu0
        %v472 = vadd.f32 0.0, %v471
        %v473 = vpop.f32.mrb[0].mxu0
        %v474 = vadd.f32 0.0, %v473
        %v475 = vpop.f32.mrb[0].mxu0
        %v476 = vadd.f32 0.0, %v475
        %477 = vmatprep.mubr.bf16.mxu0 0
        %478 = vmatmul.mubr.bf16.gmra.mrb[0].mxu0 %v394
        %v479 = vpop.f32.mrb[0].mxu0
        %v480 = vadd.f32 0.0, %v479
        %v481 = vpop.f32.mrb[0].mxu0
        %v482 = vadd.f32 0.0, %v481
        %v483 = vpop.f32.mrb[0].mxu0
        %v484 = vadd.f32 0.0, %v483
        %v485 = vpop.f32.mrb[0].mxu0
        %v486 = vadd.f32 0.0, %v485
        %487 = vmatprep.mubr.bf16.mxu0 0
        %488 = vmatmul.mubr.bf16.gmra.mrb[0].mxu0 %v397
        %v489 = vpop.f32.mrb[0].mxu0
        %v490 = vadd.f32 0.0, %v489
        %v491 = vpop.f32.mrb[0].mxu0
        %v492 = vadd.f32 0.0, %v491
        %v493 = vpop.f32.mrb[0].mxu0
        %v494 = vadd.f32 0.0, %v493
        %v495 = vpop.f32.mrb[0].mxu0
        %v496 = vadd.f32 0.0, %v495
        %497 = vmatprep.mubr.bf16.mxu0 0
        %498 = vmatmul.mubr.bf16.gmra.mrb[0].mxu0 %v400
        %v499 = vpop.f32.mrb[0].mxu0
        %v500 = vadd.f32 0.0, %v499
        %v501 = vpop.f32.mrb[0].mxu0
        %v502 = vadd.f32 0.0, %v501
        %v503 = vpop.f32.mrb[0].mxu0
        %v504 = vadd.f32 0.0, %v503
        %v505 = vpop.f32.mrb[0].mxu0
        %v506 = vadd.f32 0.0, %v505
        %507 = vmatprep.mubr.bf16.mxu0 0
        %508 = vmatmul.mubr.bf16.gmra.mrb[0].mxu0 %v403
        %v509 = vpop.f32.mrb[0].mxu0
        %v510 = vadd.f32 0.0, %v509
        %v511 = vpop.f32.mrb[0].mxu0
        %v512 = vadd.f32 0.0, %v511
        %v513 = vpop.f32.mrb[0].mxu0
        %v514 = vadd.f32 0.0, %v513
        %v515 = vpop.f32.mrb[0].mxu0
        %v516 = vadd.f32 0.0, %v515
        %517 = vdwg.mxu0
        %v518 = vrot.slane %v440, 1
        %v519 = vrot.slane %v444, 1
        %v520 = vrot.slane %v450, 1
        %v521 = vrot.slane %v454, 1
        %v522 = vrot.slane %v460, 1
        %v523 = vrot.slane %v464, 1
        %v524 = vrot.slane %v470, 1
        %v525 = vrot.slane %v474, 1
        %v526 = vrot.slane %v480, 1
        %v527 = vrot.slane %v484, 1
        %v528 = vrot.slane %v490, 1
        %v529 = vrot.slane %v494, 1
        %v530 = vrot.slane %v500, 1
        %v531 = vrot.slane %v504, 1
        %v532 = vrot.slane %v510, 1
        %v533 = vrot.slane %v514, 1
        %v534 = vlaneseq
        %v535 = vshrl.u32 %v534, 7
        %vm536 = vcmp.lt.s32.totalorder %v535, 7
        %v537 = vsel %vm536, %v532, %v533
        %v538 = vsel %vm536, %v531, %v532
        %v539 = vsel %vm536, %v530, %v531
        %v540 = vsel %vm536, %v529, %v530
        %v541 = vsel %vm536, %v528, %v529
        %v542 = vsel %vm536, %v527, %v528
        %v543 = vsel %vm536, %v526, %v527
        %v544 = vsel %vm536, %v525, %v526
        %v545 = vsel %vm536, %v524, %v525
        %v546 = vsel %vm536, %v523, %v524
        %v547 = vsel %vm536, %v522, %v523
        %v548 = vsel %vm536, %v521, %v522
        %v549 = vsel %vm536, %v520, %v521
        %v550 = vsel %vm536, %v519, %v520
        %v551 = vsel %vm536, %v518, %v519
        %v552 = vsel %vm536, %v533, %v518
        %v553 = vrot.slane %v440, 2
        %v554 = vrot.slane %v444, 2
        %v555 = vrot.slane %v450, 2
        %v556 = vrot.slane %v454, 2
        %v557 = vrot.slane %v460, 2
        %v558 = vrot.slane %v464, 2
        %v559 = vrot.slane %v470, 2
        %v560 = vrot.slane %v474, 2
        %v561 = vrot.slane %v480, 2
        %v562 = vrot.slane %v484, 2
        %v563 = vrot.slane %v490, 2
        %v564 = vrot.slane %v494, 2
        %v565 = vrot.slane %v500, 2
        %v566 = vrot.slane %v504, 2
        %v567 = vrot.slane %v510, 2
        %v568 = vrot.slane %v514, 2
        %vm569 = vcmp.lt.s32.totalorder %v535, 6
        %v570 = vsel %vm569, %v567, %v568
        %v571 = vsel %vm569, %v566, %v567
        %v572 = vsel %vm569, %v565, %v566
        %v573 = vsel %vm569, %v564, %v565
        %v574 = vsel %vm569, %v563, %v564
        %v575 = vsel %vm569, %v562, %v563
        %v576 = vsel %vm569, %v561, %v562
        %v577 = vsel %vm569, %v560, %v561
        %v578 = vsel %vm569, %v559, %v560
        %v579 = vsel %vm569, %v558, %v559
        %v580 = vsel %vm569, %v557, %v558
        %v581 = vsel %vm569, %v556, %v557
        %v582 = vsel %vm569, %v555, %v556
        %v583 = vsel %vm569, %v554, %v555
        %v584 = vsel %vm569, %v553, %v554
        %v585 = vsel %vm569, %v568, %v553
        %v586 = vrot.slane %v442, 3
        %v587 = vrot.slane %v446, 3
        %v588 = vrot.slane %v452, 3
        %v589 = vrot.slane %v456, 3
        %v590 = vrot.slane %v462, 3
        %v591 = vrot.slane %v466, 3
        %v592 = vrot.slane %v472, 3
        %v593 = vrot.slane %v476, 3
        %v594 = vrot.slane %v482, 3
        %v595 = vrot.slane %v486, 3
        %v596 = vrot.slane %v492, 3
        %v597 = vrot.slane %v496, 3
        %v598 = vrot.slane %v502, 3
        %v599 = vrot.slane %v506, 3
        %v600 = vrot.slane %v512, 3
        %v601 = vrot.slane %v516, 3
        %vm602 = vcmp.lt.s32.totalorder %v535, 5
        %v603 = vsel %vm602, %v600, %v601
        %v604 = vsel %vm602, %v599, %v600
        %v605 = vsel %vm602, %v598, %v599
        %v606 = vsel %vm602, %v597, %v598
        %v607 = vsel %vm602, %v596, %v597
        %v608 = vsel %vm602, %v595, %v596
        %v609 = vsel %vm602, %v594, %v595
        %v610 = vsel %vm602, %v593, %v594
        %v611 = vsel %vm602, %v592, %v593
        %v612 = vsel %vm602, %v591, %v592
        %v613 = vsel %vm602, %v590, %v591
        %v614 = vsel %vm602, %v589, %v590
        %v615 = vsel %vm602, %v588, %v589
        %v616 = vsel %vm602, %v587, %v588
        %v617 = vsel %vm602, %v586, %v587
        %v618 = vsel %vm602, %v601, %v586
        %635 = vrot.lane.b32.xlu0 %v551, 112
        %v636 = vpop.permute.xlu0 %635
        %637 = vrot.lane.b32.xlu0 %v550, 112
        %v638 = vpop.permute.xlu0 %637
        %639 = vrot.lane.b32.xlu0 %v549, 112
        %v640 = vpop.permute.xlu0 %639
        %641 = vrot.lane.b32.xlu0 %v548, 112
        %v642 = vpop.permute.xlu0 %641
        %643 = vrot.lane.b32.xlu0 %v547, 112
        %v644 = vpop.permute.xlu0 %643
        %645 = vrot.lane.b32.xlu0 %v546, 112
        %v646 = vpop.permute.xlu0 %645
        %647 = vrot.lane.b32.xlu0 %v545, 112
        %v648 = vpop.permute.xlu0 %647
        %649 = vrot.lane.b32.xlu0 %v544, 112
        %v650 = vpop.permute.xlu0 %649
        %651 = vrot.lane.b32.xlu0 %v543, 112
        %v652 = vpop.permute.xlu0 %651
        %653 = vrot.lane.b32.xlu0 %v542, 112
        %v654 = vpop.permute.xlu0 %653
        %655 = vrot.lane.b32.xlu0 %v541, 112
        %v656 = vpop.permute.xlu0 %655
        %657 = vrot.lane.b32.xlu0 %v540, 112
        %v658 = vpop.permute.xlu0 %657
        %659 = vrot.lane.b32.xlu0 %v539, 112
        %v660 = vpop.permute.xlu0 %659
        %661 = vrot.lane.b32.xlu0 %v538, 112
        %v662 = vpop.permute.xlu0 %661
        %663 = vrot.lane.b32.xlu0 %v537, 112
        %v664 = vpop.permute.xlu0 %663
        %665 = vrot.lane.b32.xlu0 %v552, 112
        %v666 = vpop.permute.xlu0 %665
        %v683 = vadd.f32 %v440, %v636
        %v684 = vadd.f32 %v444, %v638
        %v685 = vadd.f32 %v450, %v640
        %v686 = vadd.f32 %v454, %v642
        %v687 = vadd.f32 %v460, %v644
        %v688 = vadd.f32 %v464, %v646
        %v689 = vadd.f32 %v470, %v648
        %v690 = vadd.f32 %v474, %v650
        %v691 = vadd.f32 %v480, %v652
        %v692 = vadd.f32 %v484, %v654
        %v693 = vadd.f32 %v490, %v656
        %v694 = vadd.f32 %v494, %v658
        %v695 = vadd.f32 %v500, %v660
        %v696 = vadd.f32 %v504, %v662
        %v697 = vadd.f32 %v510, %v664
        %v698 = vadd.f32 %v514, %v666
        %v699 = vld [vmem:[#allocation7] sm:$0x7]
        %v700 = vlaneseq
        %v701 = vshrl.u32 %v700, 7
        %v702 = vsub.s32 0, %v701
        %v703 = vrot.slane %v699, %v702
        %v704 = vadd.f32 %v683, %v703
        %v705 = vadd.f32 %v684, %v703
        %v706 = vadd.f32 %v685, %v703
        %v707 = vadd.f32 %v686, %v703
        %v708 = vadd.f32 %v687, %v703
        %v709 = vadd.f32 %v688, %v703
        %v710 = vadd.f32 %v689, %v703
        %v711 = vadd.f32 %v690, %v703
        %v712 = vadd.f32 %v691, %v703
        %v713 = vadd.f32 %v692, %v703
        %v714 = vadd.f32 %v693, %v703
        %v715 = vadd.f32 %v694, %v703
        %v716 = vadd.f32 %v695, %v703
        %v717 = vadd.f32 %v696, %v703
        %v718 = vadd.f32 %v697, %v703
        %v719 = vadd.f32 %v698, %v703
        %v720 = vmax.f32 %v704, 0.0
        %v721 = vmax.f32 %v705, 0.0
        %v722 = vmax.f32 %v706, 0.0
        %v723 = vmax.f32 %v707, 0.0
        %v724 = vmax.f32 %v708, 0.0
        %v725 = vmax.f32 %v709, 0.0
        %v726 = vmax.f32 %v710, 0.0
        %v727 = vmax.f32 %v711, 0.0
        %v728 = vmax.f32 %v712, 0.0
        %v729 = vmax.f32 %v713, 0.0
        %v730 = vmax.f32 %v714, 0.0
        %v731 = vmax.f32 %v715, 0.0
        %v732 = vmax.f32 %v716, 0.0
        %v733 = vmax.f32 %v717, 0.0
        %v734 = vmax.f32 %v718, 0.0
        %v735 = vmax.f32 %v719, 0.0
        %v736 = vadd.s32 %v535, 8
        %vm737 = vcmp.lt.s32.totalorder %v535, 15
        %vm738 = vcmp.lt.s32.totalorder %v736, 15
        %v739 = vsel %vm737, %v720, 0.0
        %v740 = vsel %vm738, %v721, 0.0
        %v741 = vsel %vm737, %v722, 0.0
        %v742 = vsel %vm738, %v723, 0.0
        %v743 = vsel %vm737, %v724, 0.0
        %v744 = vsel %vm738, %v725, 0.0
        %v745 = vsel %vm737, %v726, 0.0
        %v746 = vsel %vm738, %v727, 0.0
        %v747 = vsel %vm737, %v728, 0.0
        %v748 = vsel %vm738, %v729, 0.0
        %v749 = vsel %vm737, %v730, 0.0
        %v750 = vsel %vm738, %v731, 0.0
        %v751 = vsel %vm737, %v732, 0.0
        %v752 = vsel %vm738, %v733, 0.0
        %v753 = vsel %vm737, %v734, 0.0
        %v754 = vsel %vm738, %v735, 0.0
        %vm755 = vcmask 130048
        %v756 = vsel %vm755, %v739, -inf
        %v757 = vsel %vm755, %v740, -inf
        %v758 = vmax.f32 %v756, %v757
        %v759 = vrot.slane %v758, 4
        %v760 = vmax.f32 %v758, %v759
        %v761 = vrot.slane %v760, 2
        %v762 = vmax.f32 %v760, %v761
        %v763 = vrot.slane %v762, 1
        %v764 = vmax.f32 %v762, %v763
        %v765 = vsel %vm755, %v741, -inf
        %v766 = vsel %vm755, %v742, -inf
        %v767 = vmax.f32 %v765, %v766
        %v768 = vrot.slane %v767, 4
        %v769 = vmax.f32 %v767, %v768
        %v770 = vrot.slane %v769, 2
        %v771 = vmax.f32 %v769, %v770
        %v772 = vrot.slane %v771, 1
        %v773 = vmax.f32 %v771, %v772
        %v774 = vsel %vm755, %v743, -inf
        %v775 = vsel %vm755, %v744, -inf
        %v776 = vmax.f32 %v774, %v775
        %v777 = vrot.slane %v776, 4
        %v778 = vmax.f32 %v776, %v777
        %v779 = vrot.slane %v778, 2
        %v780 = vmax.f32 %v778, %v779
        %v781 = vrot.slane %v780, 1
        %v782 = vmax.f32 %v780, %v781
        %v783 = vsel %vm755, %v745, -inf
        %v784 = vsel %vm755, %v746, -inf
        %v785 = vmax.f32 %v783, %v784
        %v786 = vrot.slane %v785, 4
        %v787 = vmax.f32 %v785, %v786
        %v788 = vrot.slane %v787, 2
        %v789 = vmax.f32 %v787, %v788
        %v790 = vrot.slane %v789, 1
        %v791 = vmax.f32 %v789, %v790
        %v792 = vsel %vm755, %v747, -inf
        %v793 = vsel %vm755, %v748, -inf
        %v794 = vmax.f32 %v792, %v793
        %v795 = vrot.slane %v794, 4
        %v796 = vmax.f32 %v794, %v795
        %v797 = vrot.slane %v796, 2
        %v798 = vmax.f32 %v796, %v797
        %v799 = vrot.slane %v798, 1
        %v800 = vmax.f32 %v798, %v799
        %v801 = vsel %vm755, %v749, -inf
        %v802 = vsel %vm755, %v750, -inf
        %v803 = vmax.f32 %v801, %v802
        %v804 = vrot.slane %v803, 4
        %v805 = vmax.f32 %v803, %v804
        %v806 = vrot.slane %v805, 2
        %v807 = vmax.f32 %v805, %v806
        %v808 = vrot.slane %v807, 1
        %v809 = vmax.f32 %v807, %v808
        %v810 = vsel %vm755, %v751, -inf
        %v811 = vsel %vm755, %v752, -inf
        %v812 = vmax.f32 %v810, %v811
        %v813 = vrot.slane %v812, 4
        %v814 = vmax.f32 %v812, %v813
        %v815 = vrot.slane %v814, 2
        %v816 = vmax.f32 %v814, %v815
        %v817 = vrot.slane %v816, 1
        %v818 = vmax.f32 %v816, %v817
        %v819 = vsel %vm755, %v753, -inf
        %v820 = vsel %vm755, %v754, -inf
        %v821 = vmax.f32 %v819, %v820
        %v822 = vrot.slane %v821, 4
        %v823 = vmax.f32 %v821, %v822
        %v824 = vrot.slane %v823, 2
        %v825 = vmax.f32 %v823, %v824
        %v826 = vrot.slane %v825, 1
        %v827 = vmax.f32 %v825, %v826
        %v828 = vld [vmem:[#allocation8] sm:$0xff]
        %v829 = vld [vmem:[#allocation8 + $0x8] sm:$0xff]
        %v830 = vld [vmem:[#allocation8 + $0x10] sm:$0xff]
        %v831 = vld [vmem:[#allocation8 + $0x18] sm:$0xff]
        %v832 = vld [vmem:[#allocation8 + $0x20] sm:$0xff]
        %v833 = vld [vmem:[#allocation8 + $0x28] sm:$0xff]
        %850 = vrot.lane.b32.xlu0 %v584, 96
        %v851 = vpop.permute.xlu0 %850
        %852 = vrot.lane.b32.xlu0 %v583, 96
        %v853 = vpop.permute.xlu0 %852
        %854 = vrot.lane.b32.xlu0 %v582, 96
        %v855 = vpop.permute.xlu0 %854
        %856 = vrot.lane.b32.xlu0 %v581, 96
        %v857 = vpop.permute.xlu0 %856
        %858 = vrot.lane.b32.xlu0 %v580, 96
        %v859 = vpop.permute.xlu0 %858
        %860 = vrot.lane.b32.xlu0 %v579, 96
        %v861 = vpop.permute.xlu0 %860
        %862 = vrot.lane.b32.xlu0 %v578, 96
        %v863 = vpop.permute.xlu0 %862
        %864 = vrot.lane.b32.xlu0 %v577, 96
        %v865 = vpop.permute.xlu0 %864
        %866 = vrot.lane.b32.xlu0 %v576, 96
        %v867 = vpop.permute.xlu0 %866
        %868 = vrot.lane.b32.xlu0 %v575, 96
        %v869 = vpop.permute.xlu0 %868
        %870 = vrot.lane.b32.xlu0 %v574, 96
        %v871 = vpop.permute.xlu0 %870
        %872 = vrot.lane.b32.xlu0 %v573, 96
        %v873 = vpop.permute.xlu0 %872
        %874 = vrot.lane.b32.xlu0 %v572, 96
        %v875 = vpop.permute.xlu0 %874
        %876 = vrot.lane.b32.xlu0 %v571, 96
        %v877 = vpop.permute.xlu0 %876
        %878 = vrot.lane.b32.xlu0 %v570, 96
        %v879 = vpop.permute.xlu0 %878
        %880 = vrot.lane.b32.xlu0 %v585, 96
        %v881 = vpop.permute.xlu0 %880
        %v898 = vadd.f32 %v683, %v851
        %v899 = vadd.f32 %v684, %v853
        %v900 = vadd.f32 %v685, %v855
        %v901 = vadd.f32 %v686, %v857
        %v902 = vadd.f32 %v687, %v859
        %v903 = vadd.f32 %v688, %v861
        %v904 = vadd.f32 %v689, %v863
        %v905 = vadd.f32 %v690, %v865
        %v906 = vadd.f32 %v691, %v867
        %v907 = vadd.f32 %v692, %v869
        %v908 = vadd.f32 %v693, %v871
        %v909 = vadd.f32 %v694, %v873
        %v910 = vadd.f32 %v695, %v875
        %v911 = vadd.f32 %v696, %v877
        %v912 = vadd.f32 %v697, %v879
        %v913 = vadd.f32 %v698, %v881
        %v914 = vlaneseq
        %v915 = vshrl.u32 %v914, 7
        %v916 = vsub.s32 1, %v915
        %v917 = vrot.slane %v699, %v916
        %919 = vrot.lane.b32.xlu0 %v917, 32
        %v920 = vpop.permute.xlu0 %919
        %v922 = vadd.f32 %v898, %v920
        %v923 = vadd.f32 %v899, %v920
        %v924 = vadd.f32 %v900, %v920
        %v925 = vadd.f32 %v901, %v920
        %v926 = vadd.f32 %v902, %v920
        %v927 = vadd.f32 %v903, %v920
        %v928 = vadd.f32 %v904, %v920
        %v929 = vadd.f32 %v905, %v920
        %v930 = vadd.f32 %v906, %v920
        %v931 = vadd.f32 %v907, %v920
        %v932 = vadd.f32 %v908, %v920
        %v933 = vadd.f32 %v909, %v920
        %v934 = vadd.f32 %v910, %v920
        %v935 = vadd.f32 %v911, %v920
        %v936 = vadd.f32 %v912, %v920
        %v937 = vadd.f32 %v913, %v920
        %v938 = vmax.f32 %v922, 0.0
        %v939 = vmax.f32 %v923, 0.0
        %v940 = vmax.f32 %v924, 0.0
        %v941 = vmax.f32 %v925, 0.0
        %v942 = vmax.f32 %v926, 0.0
        %v943 = vmax.f32 %v927, 0.0
        %v944 = vmax.f32 %v928, 0.0
        %v945 = vmax.f32 %v929, 0.0
        %v946 = vmax.f32 %v930, 0.0
        %v947 = vmax.f32 %v931, 0.0
        %v948 = vmax.f32 %v932, 0.0
        %v949 = vmax.f32 %v933, 0.0
        %v950 = vmax.f32 %v934, 0.0
        %v951 = vmax.f32 %v935, 0.0
        %v952 = vmax.f32 %v936, 0.0
        %v953 = vmax.f32 %v937, 0.0
        %vm954 = vcmp.lt.s32.totalorder %v535, 14
        %vm955 = vcmp.lt.s32.totalorder %v736, 14
        %v956 = vsel %vm954, %v938, 0.0
        %v957 = vsel %vm955, %v939, 0.0
        %v958 = vsel %vm954, %v940, 0.0
        %v959 = vsel %vm955, %v941, 0.0
        %v960 = vsel %vm954, %v942, 0.0
        %v961 = vsel %vm955, %v943, 0.0
        %v962 = vsel %vm954, %v944, 0.0
        %v963 = vsel %vm955, %v945, 0.0
        %v964 = vsel %vm954, %v946, 0.0
        %v965 = vsel %vm955, %v947, 0.0
        %v966 = vsel %vm954, %v948, 0.0
        %v967 = vsel %vm955, %v949, 0.0
        %v968 = vsel %vm954, %v950, 0.0
        %v969 = vsel %vm955, %v951, 0.0
        %v970 = vsel %vm954, %v952, 0.0
        %v971 = vsel %vm955, %v953, 0.0
        %vm972 = vcmask 392448
        %v973 = vsel %vm972, %v956, -inf
        %v974 = vsel %vm972, %v957, -inf
        %v975 = vmax.f32 %v973, %v974
        %v976 = vrot.slane %v975, 4
        %v977 = vmax.f32 %v975, %v976
        %v978 = vrot.slane %v977, 2
        %v979 = vmax.f32 %v977, %v978
        %v980 = vrot.slane %v979, 1
        %v981 = vmax.f32 %v979, %v980
        %v982 = vsel %vm972, %v958, -inf
        %v983 = vsel %vm972, %v959, -inf
        %v984 = vmax.f32 %v982, %v983
        %v985 = vrot.slane %v984, 4
        %v986 = vmax.f32 %v984, %v985
        %v987 = vrot.slane %v986, 2
        %v988 = vmax.f32 %v986, %v987
        %v989 = vrot.slane %v988, 1
        %v990 = vmax.f32 %v988, %v989
        %v991 = vsel %vm972, %v960, -inf
        %v992 = vsel %vm972, %v961, -inf
        %v993 = vmax.f32 %v991, %v992
        %v994 = vrot.slane %v993, 4
        %v995 = vmax.f32 %v993, %v994
        %v996 = vrot.slane %v995, 2
        %v997 = vmax.f32 %v995, %v996
        %v998 = vrot.slane %v997, 1
        %v999 = vmax.f32 %v997, %v998
        %v1000 = vsel %vm972, %v962, -inf
        %v1001 = vsel %vm972, %v963, -inf
        %v1002 = vmax.f32 %v1000, %v1001
        %v1003 = vrot.slane %v1002, 4
        %v1004 = vmax.f32 %v1002, %v1003
        %v1005 = vrot.slane %v1004, 2
        %v1006 = vmax.f32 %v1004, %v1005
        %v1007 = vrot.slane %v1006, 1
        %v1008 = vmax.f32 %v1006, %v1007
        %v1009 = vsel %vm972, %v964, -inf
        %v1010 = vsel %vm972, %v965, -inf
        %v1011 = vmax.f32 %v1009, %v1010
        %v1012 = vrot.slane %v1011, 4
        %v1013 = vmax.f32 %v1011, %v1012
        %v1014 = vrot.slane %v1013, 2
        %v1015 = vmax.f32 %v1013, %v1014
        %v1016 = vrot.slane %v1015, 1
        %v1017 = vmax.f32 %v1015, %v1016
        %v1018 = vsel %vm972, %v966, -inf
        %v1019 = vsel %vm972, %v967, -inf
        %v1020 = vmax.f32 %v1018, %v1019
        %v1021 = vrot.slane %v1020, 4
        %v1022 = vmax.f32 %v1020, %v1021
        %v1023 = vrot.slane %v1022, 2
        %v1024 = vmax.f32 %v1022, %v1023
        %v1025 = vrot.slane %v1024, 1
        %v1026 = vmax.f32 %v1024, %v1025
        %v1027 = vsel %vm972, %v968, -inf
        %v1028 = vsel %vm972, %v969, -inf
        %v1029 = vmax.f32 %v1027, %v1028
        %v1030 = vrot.slane %v1029, 4
        %v1031 = vmax.f32 %v1029, %v1030
        %v1032 = vrot.slane %v1031, 2
        %v1033 = vmax.f32 %v1031, %v1032
        %v1034 = vrot.slane %v1033, 1
        %v1035 = vmax.f32 %v1033, %v1034
        %v1036 = vsel %vm972, %v970, -inf
        %v1037 = vsel %vm972, %v971, -inf
        %v1038 = vmax.f32 %v1036, %v1037
        %v1039 = vrot.slane %v1038, 4
        %v1040 = vmax.f32 %v1038, %v1039
        %v1041 = vrot.slane %v1040, 2
        %v1042 = vmax.f32 %v1040, %v1041
        %v1043 = vrot.slane %v1042, 1
        %v1044 = vmax.f32 %v1042, %v1043
        %vm1053 = vcmask 1041409
        %v1054 = vsel %vm1053, %v990, %v981
        %vm1055 = vcmask 1042434
        %v1056 = vsel %vm1055, %v999, %v1054
        %vm1057 = vcmask 1043459
        %v1058 = vsel %vm1057, %v1008, %v1056
        %vm1059 = vcmask 1044484
        %v1060 = vsel %vm1059, %v1017, %v1058
        %vm1061 = vcmask 1045509
        %v1062 = vsel %vm1061, %v1026, %v1060
        %vm1063 = vcmask 1046534
        %v1064 = vsel %vm1063, %v1035, %v1062
        %vm1065 = vcmask 1047559
        %v1066 = vsel %vm1065, %v1044, %v1064
        %1067 = vrot.lane.b32.xlu0 %v1066, 96
        %v1068 = vpop.permute.xlu0 %1067
        %v1069 = vsel %vm755, %v1068, 0
        %1071 = vmatprep.subr.mxu0 0.0
        %1072 = vmatpush1.msra.mxu0 %v830
        %1073 = vmatprep.subr.mxu0 0.0
        %1074 = vmatpush1.msra.mxu0 %v831
        %1075 = vmatprep.subr.mxu0 0.0
        %1076 = vmatpush1.msra.mxu0 0.0
        %1077 = vmatprep.subr.mxu0 0.0
        %1078 = vmatpush1.msra.mxu0 0.0
        %1079 = vmatprep.subr.mxu0 0.0
        %1080 = vmatpush1.msra.mxu0 0.0
        %1081 = vmatprep.subr.mxu0 0.0
        %1082 = vmatpush1.msra.mxu0 0.0
        %1083 = vmatprep.subr.mxu0 0.0
        %1084 = vmatpush1.msra.mxu0 0.0
        %1085 = vmatprep.subr.mxu0 0.0
        %1086 = vmatpush1.msra.mxu0 0.0
        %1087 = vmatprep.subr.mxu0 0.0
        %1088 = vmatpush1.msra.mxu0 0.0
        %1089 = vmatprep.subr.mxu0 0.0
        %1090 = vmatpush1.msra.mxu0 0.0
        %1091 = vmatprep.subr.mxu0 0.0
        %1092 = vmatpush1.msra.mxu0 0.0
        %1093 = vmatprep.subr.mxu0 0.0
        %1094 = vmatpush1.msra.mxu0 0.0
        %1095 = vmatprep.subr.mxu0 0.0
        %1096 = vmatpush1.msra.mxu0 0.0
        %1097 = vmatprep.subr.mxu0 0.0
        %1098 = vmatpush1.msra.mxu0 0.0
        %1099 = vmatprep.subr.mxu0 0.0
        %1100 = vmatpush1.msra.mxu0 0.0
        %1101 = vmatprep.subr.mxu0 0.0
        %1102 = vmatpush1.msra.mxu0 0.0
        %1103 = vmatprep.subr.mxu0 0.0
        %1104 = vmatpush1.msra.mxu0 0.0
        %1105 = vmatprep.subr.mxu0 0.0
        %1106 = vmatpush1.msra.mxu0 0.0
        %1107 = vmatprep.subr.mxu0 0.0
        %1108 = vmatpush1.msra.mxu0 0.0
        %1109 = vmatprep.subr.mxu0 0.0
        %1110 = vmatpush1.msra.mxu0 0.0
        %1111 = vmatprep.subr.mxu0 0.0
        %1112 = vmatpush1.msra.mxu0 0.0
        %1113 = vmatprep.subr.mxu0 0.0
        %1114 = vmatpush1.msra.mxu0 0.0
        %1115 = vmatprep.subr.mxu0 0.0
        %1116 = vmatpush1.msra.mxu0 0.0
        %1117 = vmatprep.subr.mxu0 0.0
        %1118 = vmatpush1.msra.mxu0 0.0
        %1119 = vmatprep.subr.mxu0 0.0
        %1120 = vmatpush1.msra.mxu0 0.0
        %1121 = vmatprep.subr.mxu0 0.0
        %1122 = vmatpush1.msra.mxu0 0.0
        %1123 = vmatprep.subr.mxu0 0.0
        %1124 = vmatpush1.msra.mxu0 0.0
        %1125 = vmatprep.subr.mxu0 0.0
        %1126 = vmatpush1.msra.mxu0 0.0
        %1127 = vmatprep.subr.mxu0 0.0
        %1128 = vmatpush1.msra.mxu0 0.0
        %1129 = vmatprep.subr.mxu0 0.0
        %1130 = vmatpush1.msra.mxu0 0.0
        %1131 = vmatprep.subr.mxu0 0.0
        %1132 = vmatpush1.msra.mxu0 0.0
        %1133 = vmatprep.subr.mxu0 0.0
        %1134 = vmatpush1.msra.mxu0 0.0
        %1135 = vmatprep.mubr.f32.mxu0 0.0
        %1136 = vmatmul.mubr.f32.gmra.mrb[0].mxu0 %v1069
        %v1137 = vpop.f32.mrb[0].mxu0
        %v1138 = vadd.f32 0.0, %v1137
        %v1139 = vpop.f32.mrb[0].mxu0
        %1140 = vdwg.mxu0
        %v1149 = vsel %vm1053, %v773, %v764
        %v1150 = vsel %vm1055, %v782, %v1149
        %v1151 = vsel %vm1057, %v791, %v1150
        %v1152 = vsel %vm1059, %v800, %v1151
        %v1153 = vsel %vm1061, %v809, %v1152
        %v1154 = vsel %vm1063, %v818, %v1153
        %v1155 = vsel %vm1065, %v827, %v1154
        %v1156 = vsel %vm755, %v1155, 0
        %1158 = vmatprep.subr.mxu0 0.0
        %1159 = vmatpush1.msra.mxu0 %v828
        %1160 = vmatprep.subr.mxu0 0.0
        %1161 = vmatpush1.msra.mxu0 %v829
        %1162 = vmatprep.subr.mxu0 0.0
        %1163 = vmatpush1.msra.mxu0 0.0
        %1164 = vmatprep.subr.mxu0 0.0
        %1165 = vmatpush1.msra.mxu0 0.0
        %1166 = vmatprep.subr.mxu0 0.0
        %1167 = vmatpush1.msra.mxu0 0.0
        %1168 = vmatprep.subr.mxu0 0.0
        %1169 = vmatpush1.msra.mxu0 0.0
        %1170 = vmatprep.subr.mxu0 0.0
        %1171 = vmatpush1.msra.mxu0 0.0
        %1172 = vmatprep.subr.mxu0 0.0
        %1173 = vmatpush1.msra.mxu0 0.0
        %1174 = vmatprep.subr.mxu0 0.0
        %1175 = vmatpush1.msra.mxu0 0.0
        %1176 = vmatprep.subr.mxu0 0.0
        %1177 = vmatpush1.msra.mxu0 0.0
        %1178 = vmatprep.subr.mxu0 0.0
        %1179 = vmatpush1.msra.mxu0 0.0
        %1180 = vmatprep.subr.mxu0 0.0
        %1181 = vmatpush1.msra.mxu0 0.0
        %1182 = vmatprep.subr.mxu0 0.0
        %1183 = vmatpush1.msra.mxu0 0.0
        %1184 = vmatprep.subr.mxu0 0.0
        %1185 = vmatpush1.msra.mxu0 0.0
        %1186 = vmatprep.subr.mxu0 0.0
        %1187 = vmatpush1.msra.mxu0 0.0
        %1188 = vmatprep.subr.mxu0 0.0
        %1189 = vmatpush1.msra.mxu0 0.0
        %1190 = vmatprep.subr.mxu0 0.0
        %1191 = vmatpush1.msra.mxu0 0.0
        %1192 = vmatprep.subr.mxu0 0.0
        %1193 = vmatpush1.msra.mxu0 0.0
        %1194 = vmatprep.subr.mxu0 0.0
        %1195 = vmatpush1.msra.mxu0 0.0
        %1196 = vmatprep.subr.mxu0 0.0
        %1197 = vmatpush1.msra.mxu0 0.0
        %1198 = vmatprep.subr.mxu0 0.0
        %1199 = vmatpush1.msra.mxu0 0.0
        %1200 = vmatprep.subr.mxu0 0.0
        %1201 = vmatpush1.msra.mxu0 0.0
        %1202 = vmatprep.subr.mxu0 0.0
        %1203 = vmatpush1.msra.mxu0 0.0
        %1204 = vmatprep.subr.mxu0 0.0
        %1205 = vmatpush1.msra.mxu0 0.0
        %1206 = vmatprep.subr.mxu0 0.0
        %1207 = vmatpush1.msra.mxu0 0.0
        %1208 = vmatprep.subr.mxu0 0.0
        %1209 = vmatpush1.msra.mxu0 0.0
        %1210 = vmatprep.subr.mxu0 0.0
        %1211 = vmatpush1.msra.mxu0 0.0
        %1212 = vmatprep.subr.mxu0 0.0
        %1213 = vmatpush1.msra.mxu0 0.0
        %1214 = vmatprep.subr.mxu0 0.0
        %1215 = vmatpush1.msra.mxu0 0.0
        %1216 = vmatprep.subr.mxu0 0.0
        %1217 = vmatpush1.msra.mxu0 0.0
        %1218 = vmatprep.subr.mxu0 0.0
        %1219 = vmatpush1.msra.mxu0 0.0
        %1220 = vmatprep.subr.mxu0 0.0
        %1221 = vmatpush1.msra.mxu0 0.0
        %1222 = vmatprep.mubr.f32.mxu0 0.0
        %1223 = vmatmul.mubr.f32.gmra.mrb[0].mxu0 %v1156
        %v1224 = vpop.f32.mrb[0].mxu0
        %v1225 = vadd.f32 %v1138, %v1224
        %v1226 = vpop.f32.mrb[0].mxu0
        %1227 = vdwg.mxu0
        %1244 = vrot.lane.b32.xlu0 %v617, 80
        %v1245 = vpop.permute.xlu0 %1244
        %1246 = vrot.lane.b32.xlu0 %v616, 80
        %v1247 = vpop.permute.xlu0 %1246
        %1248 = vrot.lane.b32.xlu0 %v615, 80
        %v1249 = vpop.permute.xlu0 %1248
        %1250 = vrot.lane.b32.xlu0 %v614, 80
        %v1251 = vpop.permute.xlu0 %1250
        %1252 = vrot.lane.b32.xlu0 %v613, 80
        %v1253 = vpop.permute.xlu0 %1252
        %1254 = vrot.lane.b32.xlu0 %v612, 80
        %v1255 = vpop.permute.xlu0 %1254
        %1256 = vrot.lane.b32.xlu0 %v611, 80
        %v1257 = vpop.permute.xlu0 %1256
        %1258 = vrot.lane.b32.xlu0 %v610, 80
        %v1259 = vpop.permute.xlu0 %1258
        %1260 = vrot.lane.b32.xlu0 %v609, 80
        %v1261 = vpop.permute.xlu0 %1260
        %1262 = vrot.lane.b32.xlu0 %v608, 80
        %v1263 = vpop.permute.xlu0 %1262
        %1264 = vrot.lane.b32.xlu0 %v607, 80
        %v1265 = vpop.permute.xlu0 %1264
        %1266 = vrot.lane.b32.xlu0 %v606, 80
        %v1267 = vpop.permute.xlu0 %1266
        %1268 = vrot.lane.b32.xlu0 %v605, 80
        %v1269 = vpop.permute.xlu0 %1268
        %1270 = vrot.lane.b32.xlu0 %v604, 80
        %v1271 = vpop.permute.xlu0 %1270
        %1272 = vrot.lane.b32.xlu0 %v603, 80
        %v1273 = vpop.permute.xlu0 %1272
        %1274 = vrot.lane.b32.xlu0 %v618, 80
        %v1275 = vpop.permute.xlu0 %1274
        %v1292 = vadd.f32 %v898, %v1245
        %v1293 = vadd.f32 %v899, %v1247
        %v1294 = vadd.f32 %v900, %v1249
        %v1295 = vadd.f32 %v901, %v1251
        %v1296 = vadd.f32 %v902, %v1253
        %v1297 = vadd.f32 %v903, %v1255
        %v1298 = vadd.f32 %v904, %v1257
        %v1299 = vadd.f32 %v905, %v1259
        %v1300 = vadd.f32 %v906, %v1261
        %v1301 = vadd.f32 %v907, %v1263
        %v1302 = vadd.f32 %v908, %v1265
        %v1303 = vadd.f32 %v909, %v1267
        %v1304 = vadd.f32 %v910, %v1269
        %v1305 = vadd.f32 %v911, %v1271
        %v1306 = vadd.f32 %v912, %v1273
        %v1307 = vadd.f32 %v913, %v1275
        %v1308 = vlaneseq
        %v1309 = vshrl.u32 %v1308, 7
        %v1310 = vsub.s32 2, %v1309
        %v1311 = vrot.slane %v699, %v1310
        %1313 = vrot.lane.b32.xlu0 %v1311, 80
        %v1314 = vpop.permute.xlu0 %1313
        %v1316 = vadd.f32 %v1292, %v1314
        %v1317 = vadd.f32 %v1293, %v1314
        %v1318 = vadd.f32 %v1294, %v1314
        %v1319 = vadd.f32 %v1295, %v1314
        %v1320 = vadd.f32 %v1296, %v1314
        %v1321 = vadd.f32 %v1297, %v1314
        %v1322 = vadd.f32 %v1298, %v1314
        %v1323 = vadd.f32 %v1299, %v1314
        %v1324 = vadd.f32 %v1300, %v1314
        %v1325 = vadd.f32 %v1301, %v1314
        %v1326 = vadd.f32 %v1302, %v1314
        %v1327 = vadd.f32 %v1303, %v1314
        %v1328 = vadd.f32 %v1304, %v1314
        %v1329 = vadd.f32 %v1305, %v1314
        %v1330 = vadd.f32 %v1306, %v1314
        %v1331 = vadd.f32 %v1307, %v1314
        %v1332 = vmax.f32 %v1316, 0.0
        %v1333 = vmax.f32 %v1317, 0.0
        %v1334 = vmax.f32 %v1318, 0.0
        %v1335 = vmax.f32 %v1319, 0.0
        %v1336 = vmax.f32 %v1320, 0.0
        %v1337 = vmax.f32 %v1321, 0.0
        %v1338 = vmax.f32 %v1322, 0.0
        %v1339 = vmax.f32 %v1323, 0.0
        %v1340 = vmax.f32 %v1324, 0.0
        %v1341 = vmax.f32 %v1325, 0.0
        %v1342 = vmax.f32 %v1326, 0.0
        %v1343 = vmax.f32 %v1327, 0.0
        %v1344 = vmax.f32 %v1328, 0.0
        %v1345 = vmax.f32 %v1329, 0.0
        %v1346 = vmax.f32 %v1330, 0.0
        %v1347 = vmax.f32 %v1331, 0.0
        %vm1348 = vcmp.lt.s32.totalorder %v535, 13
        %vm1349 = vcmp.lt.s32.totalorder %v736, 13
        %v1350 = vsel %vm1348, %v1332, 0.0
        %v1351 = vsel %vm1349, %v1333, 0.0
        %v1352 = vsel %vm1348, %v1334, 0.0
        %v1353 = vsel %vm1349, %v1335, 0.0
        %v1354 = vsel %vm1348, %v1336, 0.0
        %v1355 = vsel %vm1349, %v1337, 0.0
        %v1356 = vsel %vm1348, %v1338, 0.0
        %v1357 = vsel %vm1349, %v1339, 0.0
        %v1358 = vsel %vm1348, %v1340, 0.0
        %v1359 = vsel %vm1349, %v1341, 0.0
        %v1360 = vsel %vm1348, %v1342, 0.0
        %v1361 = vsel %vm1349, %v1343, 0.0
        %v1362 = vsel %vm1348, %v1344, 0.0
        %v1363 = vsel %vm1349, %v1345, 0.0
        %v1364 = vsel %vm1348, %v1346, 0.0
        %v1365 = vsel %vm1349, %v1347, 0.0
        %vm1366 = vcmask 786048
        %v1367 = vsel %vm1366, %v1350, -inf
        %v1368 = vsel %vm1366, %v1351, -inf
        %v1369 = vmax.f32 %v1367, %v1368
        %v1370 = vrot.slane %v1369, 4
        %v1371 = vmax.f32 %v1369, %v1370
        %v1372 = vrot.slane %v1371, 2
        %v1373 = vmax.f32 %v1371, %v1372
        %v1374 = vrot.slane %v1373, 1
        %v1375 = vmax.f32 %v1373, %v1374
        %v1376 = vsel %vm1366, %v1352, -inf
        %v1377 = vsel %vm1366, %v1353, -inf
        %v1378 = vmax.f32 %v1376, %v1377
        %v1379 = vrot.slane %v1378, 4
        %v1380 = vmax.f32 %v1378, %v1379
        %v1381 = vrot.slane %v1380, 2
        %v1382 = vmax.f32 %v1380, %v1381
        %v1383 = vrot.slane %v1382, 1
        %v1384 = vmax.f32 %v1382, %v1383
        %v1385 = vsel %vm1366, %v1354, -inf
        %v1386 = vsel %vm1366, %v1355, -inf
        %v1387 = vmax.f32 %v1385, %v1386
        %v1388 = vrot.slane %v1387, 4
        %v1389 = vmax.f32 %v1387, %v1388
        %v1390 = vrot.slane %v1389, 2
        %v1391 = vmax.f32 %v1389, %v1390
        %v1392 = vrot.slane %v1391, 1
        %v1393 = vmax.f32 %v1391, %v1392
        %v1394 = vsel %vm1366, %v1356, -inf
        %v1395 = vsel %vm1366, %v1357, -inf
        %v1396 = vmax.f32 %v1394, %v1395
        %v1397 = vrot.slane %v1396, 4
        %v1398 = vmax.f32 %v1396, %v1397
        %v1399 = vrot.slane %v1398, 2
        %v1400 = vmax.f32 %v1398, %v1399
        %v1401 = vrot.slane %v1400, 1
        %v1402 = vmax.f32 %v1400, %v1401
        %v1403 = vsel %vm1366, %v1358, -inf
        %v1404 = vsel %vm1366, %v1359, -inf
        %v1405 = vmax.f32 %v1403, %v1404
        %v1406 = vrot.slane %v1405, 4
        %v1407 = vmax.f32 %v1405, %v1406
        %v1408 = vrot.slane %v1407, 2
        %v1409 = vmax.f32 %v1407, %v1408
        %v1410 = vrot.slane %v1409, 1
        %v1411 = vmax.f32 %v1409, %v1410
        %v1412 = vsel %vm1366, %v1360, -inf
        %v1413 = vsel %vm1366, %v1361, -inf
        %v1414 = vmax.f32 %v1412, %v1413
        %v1415 = vrot.slane %v1414, 4
        %v1416 = vmax.f32 %v1414, %v1415
        %v1417 = vrot.slane %v1416, 2
        %v1418 = vmax.f32 %v1416, %v1417
        %v1419 = vrot.slane %v1418, 1
        %v1420 = vmax.f32 %v1418, %v1419
        %v1421 = vsel %vm1366, %v1362, -inf
        %v1422 = vsel %vm1366, %v1363, -inf
        %v1423 = vmax.f32 %v1421, %v1422
        %v1424 = vrot.slane %v1423, 4
        %v1425 = vmax.f32 %v1423, %v1424
        %v1426 = vrot.slane %v1425, 2
        %v1427 = vmax.f32 %v1425, %v1426
        %v1428 = vrot.slane %v1427, 1
        %v1429 = vmax.f32 %v1427, %v1428
        %v1430 = vsel %vm1366, %v1364, -inf
        %v1431 = vsel %vm1366, %v1365, -inf
        %v1432 = vmax.f32 %v1430, %v1431
        %v1433 = vrot.slane %v1432, 4
        %v1434 = vmax.f32 %v1432, %v1433
        %v1435 = vrot.slane %v1434, 2
        %v1436 = vmax.f32 %v1434, %v1435
        %v1437 = vrot.slane %v1436, 1
        %v1438 = vmax.f32 %v1436, %v1437
        %v1447 = vsel %vm1053, %v1384, %v1375
        %v1448 = vsel %vm1055, %v1393, %v1447
        %v1449 = vsel %vm1057, %v1402, %v1448
        %v1450 = vsel %vm1059, %v1411, %v1449
        %v1451 = vsel %vm1061, %v1420, %v1450
        %v1452 = vsel %vm1063, %v1429, %v1451
        %v1453 = vsel %vm1065, %v1438, %v1452
        %1454 = vrot.lane.b32.xlu0 %v1453, 48
        %v1455 = vpop.permute.xlu0 %1454
        %v1456 = vsel %vm755, %v1455, 0
        %1458 = vmatprep.subr.mxu0 0.0
        %1459 = vmatpush1.msra.mxu0 %v832
        %1460 = vmatprep.subr.mxu0 0.0
        %1461 = vmatpush1.msra.mxu0 %v833
        %1462 = vmatprep.subr.mxu0 0.0
        %1463 = vmatpush1.msra.mxu0 0.0
        %1464 = vmatprep.subr.mxu0 0.0
        %1465 = vmatpush1.msra.mxu0 0.0
        %1466 = vmatprep.subr.mxu0 0.0
        %1467 = vmatpush1.msra.mxu0 0.0
        %1468 = vmatprep.subr.mxu0 0.0
        %1469 = vmatpush1.msra.mxu0 0.0
        %1470 = vmatprep.subr.mxu0 0.0
        %1471 = vmatpush1.msra.mxu0 0.0
        %1472 = vmatprep.subr.mxu0 0.0
        %1473 = vmatpush1.msra.mxu0 0.0
        %1474 = vmatprep.subr.mxu0 0.0
        %1475 = vmatpush1.msra.mxu0 0.0
        %1476 = vmatprep.subr.mxu0 0.0
        %1477 = vmatpush1.msra.mxu0 0.0
        %1478 = vmatprep.subr.mxu0 0.0
        %1479 = vmatpush1.msra.mxu0 0.0
        %1480 = vmatprep.subr.mxu0 0.0
        %1481 = vmatpush1.msra.mxu0 0.0
        %1482 = vmatprep.subr.mxu0 0.0
        %1483 = vmatpush1.msra.mxu0 0.0
        %1484 = vmatprep.subr.mxu0 0.0
        %1485 = vmatpush1.msra.mxu0 0.0
        %1486 = vmatprep.subr.mxu0 0.0
        %1487 = vmatpush1.msra.mxu0 0.0
        %1488 = vmatprep.subr.mxu0 0.0
        %1489 = vmatpush1.msra.mxu0 0.0
        %1490 = vmatprep.subr.mxu0 0.0
        %1491 = vmatpush1.msra.mxu0 0.0
        %1492 = vmatprep.subr.mxu0 0.0
        %1493 = vmatpush1.msra.mxu0 0.0
        %1494 = vmatprep.subr.mxu0 0.0
        %1495 = vmatpush1.msra.mxu0 0.0
        %1496 = vmatprep.subr.mxu0 0.0
        %1497 = vmatpush1.msra.mxu0 0.0
        %1498 = vmatprep.subr.mxu0 0.0
        %1499 = vmatpush1.msra.mxu0 0.0
        %1500 = vmatprep.subr.mxu0 0.0
        %1501 = vmatpush1.msra.mxu0 0.0
        %1502 = vmatprep.subr.mxu0 0.0
        %1503 = vmatpush1.msra.mxu0 0.0
        %1504 = vmatprep.subr.mxu0 0.0
        %1505 = vmatpush1.msra.mxu0 0.0
        %1506 = vmatprep.subr.mxu0 0.0
        %1507 = vmatpush1.msra.mxu0 0.0
        %1508 = vmatprep.subr.mxu0 0.0
        %1509 = vmatpush1.msra.mxu0 0.0
        %1510 = vmatprep.subr.mxu0 0.0
        %1511 = vmatpush1.msra.mxu0 0.0
        %1512 = vmatprep.subr.mxu0 0.0
        %1513 = vmatpush1.msra.mxu0 0.0
        %1514 = vmatprep.subr.mxu0 0.0
        %1515 = vmatpush1.msra.mxu0 0.0
        %1516 = vmatprep.subr.mxu0 0.0
        %1517 = vmatpush1.msra.mxu0 0.0
        %1518 = vmatprep.subr.mxu0 0.0
        %1519 = vmatpush1.msra.mxu0 0.0
        %1520 = vmatprep.subr.mxu0 0.0
        %1521 = vmatpush1.msra.mxu0 0.0
        %1522 = vmatprep.mubr.f32.mxu0 0.0
        %1523 = vmatmul.mubr.f32.gmra.mrb[0].mxu0 %v1456
        %v1524 = vpop.f32.mrb[0].mxu0
        %v1525 = vadd.f32 0.0, %v1524
        %v1526 = vpop.f32.mrb[0].mxu0
        %1527 = vdwg.mxu0
        %v1528 = vadd.f32 %v1225, %v1525
        %v1529 = vld [vmem:[#allocation10] sm:$0x1]
        %v1531 = vlaneseq
        %v1532 = vshrl.u32 %v1531, 7
        %v1533 = vsub.s32 0, %v1532
        %v1534 = vrot.slane %v1529, %v1533
        %v1536 = vadd.f32 %v1528, %v1534
        %1537 = vst [vmem:[%s297] sm:$0xff] %v1536
        %s1538 = sand.u32 %s142, 1
        %s1539 = scalar_lea.sflag [#allocation4], %s1538
        %s1540 = sand.u32 %s142, 1
        %s1541 = smul.addr %s1540, 8
        %s1542 = scalar_lea.vmem [#allocation11], %s1541
        // Predicated region
        $region61: #{tpu_custom_call.1} parent=39 // pred_check
          %p1543 = pneg %p152
        $region62: #{tpu_custom_call.1} parent=39 // pred_check_branch
          %1545 = sbr.rel (%p1543) target = $region64
        $region63: #{tpu_custom_call.1} parent=39 // pred_region
          %s1547 = ssub.s32 128, 128
          %1548 = vsyncadd %s1539, %s1547
          %s1549 = smul.addr %s24, 128
          %s1550 = scalar_lea.hbm %s5, %s1549
          %s1552 = sshll.u32 %s1542, 4
          %s1553 = int_to_ptr.vmem [resolvable:$true] %s1552
          %1555 = dma.vmem_to_hbm [thread:$0]  %s1553, 128, %s1550, %s1539
        $region64: #{tpu_custom_call.1} parent=39 // pred_fallthru
          _
      $region40: #{tpu_custom_call.1} parent=5 // pred_fallthru
        _
      %p1556 = scmp.le.s32.totalorder 2, %s19
      // Predicated region
      $region65: #{tpu_custom_call.1} parent=5 // pred_check
        %p1557 = pneg %p1556
      $region66: #{tpu_custom_call.1} parent=5 // pred_check_branch
        %1559 = sbr.rel (%p1557) target = $region68
      $region67: #{tpu_custom_call.1} parent=5 // pred_region
        %s1560 = ssub.s32 %s19, 2
        // Predicated region
        $region69: #{tpu_custom_call.1} parent=67 // pred_check
          %p1561 = pneg %p158
        $region70: #{tpu_custom_call.1} parent=67 // pred_check_branch
          %1563 = sbr.rel (%p1561) target = $region72
        $region71: #{tpu_custom_call.1} parent=67 // pred_region
          %s1564 = sand.u32 %s143, 1
          %s1565 = scalar_lea.sflag [#allocation4], %s1564
          %s1566 = sand.u32 %s143, 1
          %s1567 = smul.addr %s1566, 8
          %s1568 = scalar_lea.vmem [#allocation11], %s1567
          %1569 = dma.done %s1565, 128
        $region72: #{tpu_custom_call.1} parent=67 // pred_fallthru
          _
      $region68: #{tpu_custom_call.1} parent=5 // pred_fallthru
        _
    $region6: #{tpu_custom_call.1} parent=1 // loop_footer
      %s23 = sadd.s32 1, %s19
    $region7: #{tpu_custom_call.1} parent=1 // loop_footer_branch
      %18 = sbr.rel target = $region3
    $region8: #{tpu_custom_call.1} parent=1 // loop_exit
      _
    %1570 = vsyncpa [#allocation3], 1
    %s1571 = scalar_lea.sflag [#allocation3], 1
    %1572 = vsyncpa %s1571, 1
    %1573 = vsyncpa [#allocation6], 1
    %1574 = vsyncpa [#allocation9], 1
    %1575 = vsyncpa [#allocation4], 1
    %s1576 = scalar_lea.sflag [#allocation4], 1
    %1577 = vsyncpa %s1576, 1

</llo_original>
